<compile_context>
chip_gen: v5e
topology: v5e:2x2
jax: 0.10.0
libtpu: 0.0.40
codegen_flags: <defaults>
</compile_context>

<pallas_src>
import functools

import jax
import jax.numpy as jnp
from jax import lax
from jax.experimental import pallas as pl
from jax.experimental.pallas import tpu as pltpu

_MIB = 1024 * 1024


# ----------------------------------------------------------------------------
# Pallas kernel: fused  relu(relu(x @ W1^T) @ W2^T)  on one (row, col) tile.
# ----------------------------------------------------------------------------
def _adapter_kernel(x_ref, w1_ref, w2_ref, o_ref, *, compute_dtype):
    # x_ref  : (tm, c_in)      VMEM (constant along the n axis -> resident)
    # w1_ref : (hidden, c_in)  VMEM, resident (constant index map)
    # w2_ref : (tn, hidden)    VMEM column slice of W2 (PyTorch layout)
    # o_ref  : (tm, tn)        VMEM
    x = x_ref[...].astype(compute_dtype)
    w1 = w1_ref[...].astype(compute_dtype)
    # h = x @ W1^T : contract on the last dims of both operands (no transpose
    # ever materialized in HBM or in the wrapper).
    h = lax.dot_general(x, w1, (((1,), (1,)), ((), ())),
                        preferred_element_type=jnp.float32)
    h = jnp.maximum(h, 0.0)                       # ReLU on the f32 accumulator

    w2 = w2_ref[...].astype(compute_dtype)
    # y = h @ W2^T (column slice): contract on the last dims again.
    y = lax.dot_general(h.astype(compute_dtype), w2, (((1,), (1,)), ((), ())),
                        preferred_element_type=jnp.float32)
    o_ref[...] = jnp.maximum(y, 0.0).astype(o_ref.dtype)


def _spec(shape, index_map, buffers=None):
    """BlockSpec helper: request an explicit buffer count when supported."""
    if buffers is None:
        return pl.BlockSpec(shape, index_map)
    try:
        return pl.BlockSpec(shape, index_map, pipeline_mode=pl.Buffered(buffers))
    except (TypeError, AttributeError):
        return pl.BlockSpec(shape, index_map)


def _vmem_budget_bytes():
    """~75% of physical per-core VMEM, capped at 100 MiB (headroom for Mosaic)."""
    try:
        phys = int(pltpu.get_tpu_info().vmem_capacity_bytes)
    except Exception:
        phys = 64 * _MIB                      # conservative: v7x per-TC capacity
    return min((phys * 3) // 4, 100 * _MIB)


def _call_adapter(x2, w1, w2, *, tm, tn, grid_m, grid_n, compute_dtype,
                  vmem_limit, cost, single_buffer_weights):
    M, c_in = x2.shape
    hidden = w1.shape[0]
    # Constant-index (resident) weights only need one VMEM buffer; W2 gets the
    # default double-buffering when it is sliced along the n grid axis.
    w1_buf = 1 if single_buffer_weights else None
    w2_buf = 1 if (single_buffer_weights and grid_n == 1) else None
    kernel = functools.partial(_adapter_kernel, compute_dtype=compute_dtype)
    return pl.pallas_call(
        kernel,
        out_shape=jax.ShapeDtypeStruct((M, c_in), x2.dtype),
        grid_spec=pltpu.PrefetchScalarGridSpec(
            num_scalar_prefetch=0,
            grid=(grid_m, grid_n),
            in_specs=[
                _spec((tm, c_in), lambda i, n: (i, 0)),             # x row tile
                _spec((hidden, c_in), lambda i, n: (0, 0), w1_buf),  # W1 resident
                _spec((tn, hidden), lambda i, n: (n, 0), w2_buf),    # W2 slice
            ],
            out_specs=_spec((tm, tn), lambda i, n: (i, n)),
        ),
        compiler_params=pltpu.CompilerParams(
            dimension_semantics=("parallel", "parallel"),
            vmem_limit_bytes=vmem_limit,
        ),
        cost_estimate=cost,
    )(x2, w1, w2)


def vision_adapter_forward(x, w1, w2, *, compute_dtype=jnp.bfloat16,
                           max_block_m=1024):
    """Pallas implementation of VisionAdapter.forward().

    x : (..., c_in)          activations
    w1: (hidden, c_in)       first Linear weight (PyTorch layout, no transpose)
    w2: (c_in, hidden)       second Linear weight (PyTorch layout, no transpose)
    returns: same shape/dtype as x
    """
    orig_shape = x.shape
    c_in = orig_shape[-1]
    hidden = w1.shape[0]
    assert w1.shape == (hidden, c_in), w1.shape
    assert w2.shape == (c_in, hidden), w2.shape

    x2 = x.reshape(-1, c_in)
    M = x2.shape[0]

    x_isz = jnp.dtype(x.dtype).itemsize
    o_isz = x_isz
    w1_isz = jnp.dtype(w1.dtype).itemsize
    w2_isz = jnp.dtype(w2.dtype).itemsize

    # ---- row tile derived from the VMEM budget (assumes tn = c_in, worst case)
    budget = _vmem_budget_bytes()
    weight_bytes = c_in * hidden * (w1_isz + w2_isz)     # single-buffered
    per_row = (2 * c_in * x_isz                          # double-buffered input
               + 2 * c_in * o_isz                        # double-buffered output
               + hidden * 4 + c_in * 4)                  # f32 intermediates
    tm_budget = max(8, (budget - weight_bytes) // per_row)
    tm = int(min(max_block_m, tm_budget, M))
    if tm < M:
        tm = max(8, (tm // 8) * 8)      # sublane-aligned when not the full dim
    grid_m = pl.cdiv(M, tm)

    # ---- with a single row tile, split output channels so both v7x TCs work
    grid_n = 2 if (grid_m == 1 and c_in % 256 == 0) else 1
    tn = c_in // grid_n

    # ---- real VMEM footprint (+ headroom) instead of a blanket limit --------
    footprint = (c_in * hidden * w1_isz
                 + (1 if grid_n == 1 else 2) * tn * hidden * w2_isz
                 + 2 * tm * c_in * x_isz
                 + 2 * tm * tn * o_isz
                 + tm * hidden * 4 + tm * tn * 4)
    vmem_limit = int(min(max(footprint + 8 * _MIB, 32 * _MIB), budget))

    cost = pl.CostEstimate(
        flops=int(2 * 2 * M * c_in * hidden),
        transcendentals=0,
        bytes_accessed=int(M * c_in * (x_isz + o_isz)
                           + c_in * hidden * (w1_isz + w2_isz)),
    )

    kwargs = dict(tm=tm, tn=tn, grid_m=grid_m, grid_n=grid_n,
                  compute_dtype=compute_dtype, vmem_limit=vmem_limit, cost=cost)
    try:
        out = _call_adapter(x2, w1, w2, single_buffer_weights=True, **kwargs)
    except Exception:
        # Fallback for JAX/Mosaic versions that reject pl.Buffered(1) on the
        # resident weight BlockSpecs; semantics are identical.
        out = _call_adapter(x2, w1, w2, single_buffer_weights=False, **kwargs)

    return out.reshape(orig_shape)


# ----------------------------------------------------------------------------
# Deterministic synthetic parameter construction (module __init__).
# ----------------------------------------------------------------------------
def make_params(key, c_in, reduction=4):
    hidden = c_in // reduction
    k1, k2 = jax.random.split(key)
    # Mimic PyTorch Linear default init: U(-1/sqrt(fan_in), 1/sqrt(fan_in)).
    b1 = 1.0 / (c_in ** 0.5)
    b2 = 1.0 / (hidden ** 0.5)
    w1 = jax.random.uniform(k1, (hidden, c_in), jnp.float32, -b1, b1)
    w2 = jax.random.uniform(k2, (c_in, hidden), jnp.float32, -b2, b2)
    return w1, w2


def reference_forward(x, w1, w2):
    h = jnp.maximum(jnp.dot(x, w1.T, precision=lax.Precision.HIGHEST), 0.0)
    y = jnp.maximum(jnp.dot(h, w2.T, precision=lax.Precision.HIGHEST), 0.0)
    return y


if __name__ == "__main__":
    # Small shapes: batch of 2 sequences of 32 tokens, feature dim 512,
    # reduction 4 -> hidden 128.  M=64 rows -> single row tile, which also
    # exercises the 2-way output-channel grid split.
    batch, tokens, c_in, reduction = 2, 32, 512, 4

    key = jax.random.PRNGKey(0)
    k_x, k_w = jax.random.split(key)
    x = jax.random.normal(k_x, (batch, tokens, c_in), dtype=jnp.float32)
    w1, w2 = make_params(k_w, c_in, reduction)

    y = vision_adapter_forward(x, w1, w2)
    y = jax.block_until_ready(y)

    expected = reference_forward(x.reshape(-1, c_in), w1, w2).reshape(x.shape)
    assert y.shape == x.shape, y.shape
    assert y.dtype == x.dtype
    # bf16 MXU operands (f32 accumulation) vs the f32 HIGHEST-precision
    # reference -> loosened tolerance per the perf review.
    max_err = float(jnp.max(jnp.abs(y - expected)))
    assert jnp.allclose(y, expected, rtol=2e-2, atol=2e-2), max_err

    print("KERNEL_OK")
</pallas_src>

<mosaic_0001>
module attributes {stable_mosaic.version = 11 : i64} {
  func.func @_adapter_kernel(%arg0: i32, %arg1: i32, %arg2: memref<64x512xf32, #tpu.memory_space<vmem>>, %arg3: memref<128x512xf32, #tpu.memory_space<vmem>>, %arg4: memref<256x128xf32, #tpu.memory_space<vmem>>, %arg5: memref<64x256xf32, #tpu.memory_space<vmem>>) attributes {dimension_semantics = [#tpu.dimension_semantics<parallel>, #tpu.dimension_semantics<parallel>], iteration_bounds = array<i64: 1, 2>, scalar_prefetch = 0 : i64, scratch_operands = 0 : i64, tpu.core_type = #tpu.core_type<tc>, window_params = [{transform_indices = @transform_0, window_bounds = array<i64: 64, 512>}, {pipeline_mode = #tpu.pipeline_mode<synchronous>, transform_indices = @transform_1, window_bounds = array<i64: 128, 512>}, {transform_indices = @transform_2, window_bounds = array<i64: 256, 128>}, {transform_indices = @transform_3, window_bounds = array<i64: 64, 256>}]} {
    %c0 = arith.constant 0 : index
    %c0_0 = arith.constant 0 : index
    %0 = vector.load %arg2[%c0, %c0_0] : memref<64x512xf32, #tpu.memory_space<vmem>>, vector<64x512xf32>
    %1 = arith.truncf %0 : vector<64x512xf32> to vector<64x512xbf16>
    %c0_1 = arith.constant 0 : index
    %c0_2 = arith.constant 0 : index
    %2 = vector.load %arg3[%c0_1, %c0_2] : memref<128x512xf32, #tpu.memory_space<vmem>>, vector<128x512xf32>
    %3 = arith.truncf %2 : vector<128x512xf32> to vector<128x512xbf16>
    %cst = arith.constant dense<0.000000e+00> : vector<64x128xf32>
    %4 = tpu.matmul %1, %3, %cst {dimension_numbers = #tpu.dot_dimension_numbers<[1], [1], [0], [0], [0, 0, 1, 0], [], []>} : vector<64x512xbf16>, vector<128x512xbf16>, vector<64x128xf32> -> vector<64x128xf32>
    %cst_3 = arith.constant 0.000000e+00 : f32
    %5 = vector.broadcast %cst_3 : f32 to vector<64x128xf32>
    %6 = arith.maximumf %4, %5 : vector<64x128xf32>
    %c0_4 = arith.constant 0 : index
    %c0_5 = arith.constant 0 : index
    %7 = vector.load %arg4[%c0_4, %c0_5] : memref<256x128xf32, #tpu.memory_space<vmem>>, vector<256x128xf32>
    %8 = arith.truncf %7 : vector<256x128xf32> to vector<256x128xbf16>
    %9 = arith.truncf %6 : vector<64x128xf32> to vector<64x128xbf16>
    %cst_6 = arith.constant dense<0.000000e+00> : vector<64x256xf32>
    %10 = tpu.matmul %9, %8, %cst_6 {dimension_numbers = #tpu.dot_dimension_numbers<[1], [1], [0], [0], [0, 0, 1, 0], [], []>} : vector<64x128xbf16>, vector<256x128xbf16>, vector<64x256xf32> -> vector<64x256xf32>
    %cst_7 = arith.constant 0.000000e+00 : f32
    %11 = vector.broadcast %cst_7 : f32 to vector<64x256xf32>
    %12 = arith.maximumf %10, %11 : vector<64x256xf32>
    %c0_8 = arith.constant 0 : index
    %c0_9 = arith.constant 0 : index
    %13 = vector.load %arg5[%c0_8, %c0_9] : memref<64x256xf32, #tpu.memory_space<vmem>>, vector<64x256xf32>
    tpu.vector_store %arg5[%c0_8, %c0_9], %12 {strides = array<i32>} : memref<64x256xf32, #tpu.memory_space<vmem>>, vector<64x256xf32>,
    return
  }
  func.func @transform_0(%arg0: i32, %arg1: i32) -> (i32, i32) {
    %c0_i32 = arith.constant 0 : i32
    %c0_i32_0 = arith.constant 0 : i32
    return %arg0, %c0_i32 : i32, i32
  }
  func.func @transform_1(%arg0: i32, %arg1: i32) -> (i32, i32) {
    %c0_i32 = arith.constant 0 : i32
    %c0_i32_0 = arith.constant 0 : i32
    %c0_i32_1 = arith.constant 0 : i32
    return %c0_i32, %c0_i32_0 : i32, i32
  }
  func.func @transform_2(%arg0: i32, %arg1: i32) -> (i32, i32) {
    %c0_i32 = arith.constant 0 : i32
    %c0_i32_0 = arith.constant 0 : i32
    return %arg1, %c0_i32 : i32, i32
  }
  func.func @transform_3(%arg0: i32, %arg1: i32) -> (i32, i32) {
    %c0_i32 = arith.constant 0 : i32
    return %arg0, %arg1 : i32, i32
  }
}

module attributes {stable_mosaic.version = 11 : i64} {
  func.func @_adapter_kernel(%arg0: i32, %arg1: i32, %arg2: memref<64x512xf32, #tpu.memory_space<vmem>>, %arg3: memref<128x512xf32, #tpu.memory_space<vmem>>, %arg4: memref<256x128xf32, #tpu.memory_space<vmem>>, %arg5: memref<64x256xf32, #tpu.memory_space<vmem>>) attributes {dimension_semantics = [#tpu.dimension_semantics<parallel>, #tpu.dimension_semantics<parallel>], iteration_bounds = array<i64: 1, 2>, scalar_prefetch = 0 : i64, scratch_operands = 0 : i64, tpu.core_type = #tpu.core_type<tc>, window_params = [{transform_indices = @transform_0, window_bounds = array<i64: 64, 512>}, {pipeline_mode = #tpu.pipeline_mode<synchronous>, transform_indices = @transform_1, window_bounds = array<i64: 128, 512>}, {transform_indices = @transform_2, window_bounds = array<i64: 256, 128>}, {transform_indices = @transform_3, window_bounds = array<i64: 64, 256>}]} {
    %c0 = arith.constant 0 : index
    %c0_0 = arith.constant 0 : index
    %0 = vector.load %arg2[%c0, %c0_0] : memref<64x512xf32, #tpu.memory_space<vmem>>, vector<64x512xf32>
    %1 = arith.truncf %0 : vector<64x512xf32> to vector<64x512xbf16>
    %c0_1 = arith.constant 0 : index
    %c0_2 = arith.constant 0 : index
    %2 = vector.load %arg3[%c0_1, %c0_2] : memref<128x512xf32, #tpu.memory_space<vmem>>, vector<128x512xf32>
    %3 = arith.truncf %2 : vector<128x512xf32> to vector<128x512xbf16>
    %cst = arith.constant dense<0.000000e+00> : vector<64x128xf32>
    %4 = tpu.matmul %1, %3, %cst {dimension_numbers = #tpu.dot_dimension_numbers<[1], [1], [0], [0], [0, 0, 1, 0], [], []>} : vector<64x512xbf16>, vector<128x512xbf16>, vector<64x128xf32> -> vector<64x128xf32>
    %cst_3 = arith.constant 0.000000e+00 : f32
    %5 = vector.broadcast %cst_3 : f32 to vector<64x128xf32>
    %6 = arith.maximumf %4, %5 : vector<64x128xf32>
    %c0_4 = arith.constant 0 : index
    %c0_5 = arith.constant 0 : index
    %7 = vector.load %arg4[%c0_4, %c0_5] : memref<256x128xf32, #tpu.memory_space<vmem>>, vector<256x128xf32>
    %8 = arith.truncf %7 : vector<256x128xf32> to vector<256x128xbf16>
    %9 = arith.truncf %6 : vector<64x128xf32> to vector<64x128xbf16>
    %cst_6 = arith.constant dense<0.000000e+00> : vector<64x256xf32>
    %10 = tpu.matmul %9, %8, %cst_6 {dimension_numbers = #tpu.dot_dimension_numbers<[1], [1], [0], [0], [0, 0, 1, 0], [], []>} : vector<64x128xbf16>, vector<256x128xbf16>, vector<64x256xf32> -> vector<64x256xf32>
    %cst_7 = arith.constant 0.000000e+00 : f32
    %11 = vector.broadcast %cst_7 : f32 to vector<64x256xf32>
    %12 = arith.maximumf %10, %11 : vector<64x256xf32>
    %c0_8 = arith.constant 0 : index
    %c0_9 = arith.constant 0 : index
    %13 = vector.load %arg5[%c0_8, %c0_9] : memref<64x256xf32, #tpu.memory_space<vmem>>, vector<64x256xf32>
    tpu.vector_store %arg5[%c0_8, %c0_9], %12 {strides = array<i32>} : memref<64x256xf32, #tpu.memory_space<vmem>>, vector<64x256xf32>,
    return
  }
  func.func @transform_0(%arg0: i32, %arg1: i32) -> (i32, i32) {
    %c0_i32 = arith.constant 0 : i32
    %c0_i32_0 = arith.constant 0 : i32
    return %arg0, %c0_i32 : i32, i32
  }
  func.func @transform_1(%arg0: i32, %arg1: i32) -> (i32, i32) {
    %c0_i32 = arith.constant 0 : i32
    %c0_i32_0 = arith.constant 0 : i32
    %c0_i32_1 = arith.constant 0 : i32
    return %c0_i32, %c0_i32_0 : i32, i32
  }
  func.func @transform_2(%arg0: i32, %arg1: i32) -> (i32, i32) {
    %c0_i32 = arith.constant 0 : i32
    %c0_i32_0 = arith.constant 0 : i32
    return %arg1, %c0_i32 : i32, i32
  }
  func.func @transform_3(%arg0: i32, %arg1: i32) -> (i32, i32) {
    %c0_i32 = arith.constant 0 : i32
    return %arg0, %arg1 : i32, i32
  }
}

</mosaic_0001>

<llo_original>
// kernel: tpu_custom_call.1
$region0: #{tpu_custom_call.1}
  #allocation0 [shape = 'u32[]', space=smem, size = 0x4, offset = 0x4, fixed_abs, tag = 'smem constant byte address 0x4 - core index']
  #allocation1 [shape = 'u32[72,128]{1,0:T(1,128)}', space=vmem, size = 0x9000, scoped, tag = 'internal scratch']
  %s0 = inlined_call_operand.hbm [shape: f32[64,512], index: 0, kind: input, shape index: {}]
  %s1 = inlined_call_operand.hbm [shape: f32[128,512], index: 1, kind: input, shape index: {}]
  %s2 = inlined_call_operand.hbm [shape: f32[512,128], index: 2, kind: input, shape index: {}]
  %s3 = inlined_call_operand.hbm [shape: f32[64,512], index: 3, kind: output, shape index: {}]
  %s4 = sld [smem:[#allocation0]]
  $region57: #{tpu_custom_call.1} parent=0
    _
  %s6 = ssub.s32 1, %s4
  %s7 = scalar_select 0, %s6, %s4
  $region1: #{tpu_custom_call.1} parent=0
    #allocation2 [shape = 'u8[131072]{0}', space=vmem, size = 0x20000, scoped, tag = 'input window, operand 0, single buffered']
    #allocation3 [shape = 's32[2]{0}', space=sflag, size = 0x8, scoped, tag = 'scoped memory for tpu_custom_call.1']
    #allocation4 [shape = 's32[2]{0}', space=sflag, size = 0x8, scoped, tag = 'scoped memory for tpu_custom_call.1']
    #allocation5 [shape = 'u8[262144]{0}', space=vmem, size = 0x40000, scoped, tag = 'input window, operand 1, single buffered']
    #allocation6 [shape = 's32[1]{0}', space=sflag, size = 0x4, scoped, tag = 'scoped memory for tpu_custom_call.1']
    #allocation7 [shape = 'u8[262144]{0}', space=vmem, size = 0x40000, scoped, tag = 'input window, operand 2']
    #allocation8 [shape = 'u8[131072]{0}', space=vmem, size = 0x20000, scoped, tag = 'output window, operand 0']
    %8 = vsyncpa [#allocation3], 0
    %9 = vsyncpa [#allocation6], 0
    %10 = vsyncpa [#allocation4], 0
    %s11 = scalar_lea.sflag [#allocation4], 1
    %12 = vsyncpa %s11, 0
    loop: start=0, step=1, limit=4
    $region2: #{tpu_custom_call.1} parent=1 // loop_pre_header
      _
    $region3: #{tpu_custom_call.1} parent=1 // loop_header
      %s14 = sphi 0, %s18
      %p15 = scmp.ge.s32.totalorder %s14, 4
      %s21 = sphi 0, %s33
      %s22 = sphi 0, %s29
      %s23 = sphi 0, %s21
      %s24 = sphi 0, %s22
      %s25 = sphi 0, %s23
      %s26 = sphi 0, %s24
      %s36 = sphi 0, %s38
      %s39 = sphi 0, %s36
      %s40 = sphi 0, %s39
      %s56 = sphi 0, %s40
      %s60 = sphi 0, %s60
      %s62 = sphi 0, %s60
      %s63 = sphi 0, %s62
      %s77 = sphi 0, %s63
      %s83 = sphi 0, %s85
      %s86 = sphi 0, %s83
      %s87 = sphi 0, %s86
      %s103 = sphi 0, %s87
      %s111 = sphi 0, %s113
      %s114 = sphi 0, %s111
      %s115 = sphi 0, %s114
      %s131 = sphi 0, %s115
    $region4: #{tpu_custom_call.1} parent=1 // loop_header_branch
      %17 = sbr.rel (%p15) target = $region8
    $region5: #{tpu_custom_call.1} parent=1 // loop_body
      %s19 = ssub.s32 %s14, 1
      %s20 = ssub.s32 %s14, 2
      %s27 = sadd.s32 1, %s22
      %p28 = scmp.ge.s32.totalorder %s27, 2
      %s29 = scalar_select %p28, 0, %s27
      %s30 = sadd.s32 1, %s21
      %s31 = scalar_select %p28, %s30, %s21
      %p32 = scmp.ge.s32.totalorder %s31, 1
      %s33 = scalar_select %p32, 0, %s31
      %s34 = ssub.s32 %s21, %s33
      %p35 = scmp.eq.s32.totalorder %s34, 0
      %s37 = sadd.s32 %s36, 1
      %s38 = scalar_select %p35, %s36, %s37
      %p41 = pneg %p35
      %p42 = scmp.eq.s32.totalorder %s14, 1
      %p43 = por %p41, %p42
      %p44 = scmp.ne.s32.totalorder %s36, %s39
      %p45 = scmp.eq.s32.totalorder %s14, 0
      %p46 = por %p44, %p45
      %p47 = scmp.ne.s32.totalorder %s36, %s39
      %p48 = scmp.eq.s32.totalorder %s19, 1
      %p49 = por %p47, %p48
      %p50 = scmp.ne.s32.totalorder %s39, %s40
      %p51 = scmp.eq.s32.totalorder %s19, 0
      %p52 = por %p50, %p51
      %p53 = scmp.ne.s32.totalorder %s39, %s40
      %p54 = scmp.eq.s32.totalorder %s20, 1
      %p55 = por %p53, %p54
      %p57 = scmp.ne.s32.totalorder %s40, %s56
      %p58 = scmp.eq.s32.totalorder %s20, 0
      %p59 = por %p57, %p58
      %s61 = sadd.s32 %s60, 1
      %p64 = scmp.eq.s32.totalorder %s14, 1
      %p65 = scmp.ne.s32.totalorder %s60, %s62
      %p66 = scmp.eq.s32.totalorder %s14, 0
      %p67 = por %p65, %p66
      %p68 = scmp.ne.s32.totalorder %s60, %s62
      %p69 = scmp.eq.s32.totalorder %s19, 1
      %p70 = por %p68, %p69
      %p71 = scmp.ne.s32.totalorder %s62, %s63
      %p72 = scmp.eq.s32.totalorder %s19, 0
      %p73 = por %p71, %p72
      %p74 = scmp.ne.s32.totalorder %s62, %s63
      %p75 = scmp.eq.s32.totalorder %s20, 1
      %p76 = por %p74, %p75
      %p78 = scmp.ne.s32.totalorder %s63, %s77
      %p79 = scmp.eq.s32.totalorder %s20, 0
      %p80 = por %p78, %p79
      %s81 = ssub.s32 %s22, %s29
      %p82 = scmp.eq.s32.totalorder %s81, 0
      %s84 = sadd.s32 %s83, 1
      %s85 = scalar_select %p82, %s83, %s84
      %p88 = pneg %p82
      %p89 = scmp.eq.s32.totalorder %s14, 1
      %p90 = por %p88, %p89
      %p91 = scmp.ne.s32.totalorder %s83, %s86
      %p92 = scmp.eq.s32.totalorder %s14, 0
      %p93 = por %p91, %p92
      %p94 = scmp.ne.s32.totalorder %s83, %s86
      %p95 = scmp.eq.s32.totalorder %s19, 1
      %p96 = por %p94, %p95
      %p97 = scmp.ne.s32.totalorder %s86, %s87
      %p98 = scmp.eq.s32.totalorder %s19, 0
      %p99 = por %p97, %p98
      %p100 = scmp.ne.s32.totalorder %s86, %s87
      %p101 = scmp.eq.s32.totalorder %s20, 1
      %p102 = por %p100, %p101
      %p104 = scmp.ne.s32.totalorder %s87, %s103
      %p105 = scmp.eq.s32.totalorder %s20, 0
      %p106 = por %p104, %p105
      %s107 = ssub.s32 %s21, %s33
      %s108 = ssub.s32 %s22, %s29
      %s109 = sor.u32 %s107, %s108
      %p110 = scmp.eq.s32.totalorder %s109, 0
      %s112 = sadd.s32 %s111, 1
      %s113 = scalar_select %p110, %s111, %s112
      %p116 = pneg %p110
      %p117 = scmp.eq.s32.totalorder %s14, 1
      %p118 = por %p116, %p117
      %p119 = scmp.ne.s32.totalorder %s111, %s114
      %p120 = scmp.eq.s32.totalorder %s14, 0
      %p121 = por %p119, %p120
      %p122 = scmp.ne.s32.totalorder %s111, %s114
      %p123 = scmp.eq.s32.totalorder %s19, 1
      %p124 = por %p122, %p123
      %p125 = scmp.ne.s32.totalorder %s114, %s115
      %p126 = scmp.eq.s32.totalorder %s19, 0
      %p127 = por %p125, %p126
      %p128 = scmp.ne.s32.totalorder %s114, %s115
      %p129 = scmp.eq.s32.totalorder %s20, 1
      %p130 = por %p128, %p129
      %p132 = scmp.ne.s32.totalorder %s115, %s131
      %p133 = scmp.eq.s32.totalorder %s20, 0
      %p134 = por %p132, %p133
      %p135 = scmp.le.s32.totalorder 1, %s14
      %p136 = scmp.lt.s32.totalorder %s14, 3
      %p137 = pnand %p135, %p136
      %p138 = pneg %p137
      // Predicated region
      $region9: #{tpu_custom_call.1} parent=5 // pred_check
        _
      $region10: #{tpu_custom_call.1} parent=5 // pred_check_branch
        %140 = sbr.rel (%p137) target = $region12
      $region11: #{tpu_custom_call.1} parent=5 // pred_region
        %s141 = ssub.s32 %s14, 1
        // Predicated region
        $region13: #{tpu_custom_call.1} parent=11 // pred_check
          %p142 = pneg %p52
        $region14: #{tpu_custom_call.1} parent=11 // pred_check_branch
          %144 = sbr.rel (%p142) target = $region16
        $region15: #{tpu_custom_call.1} parent=11 // pred_region
          %s145 = smul.u32 8, %s23
          %147 = vsyncadd [#allocation3], 0
          %s148 = smul.addr %s145, 4
          %s149 = smul.addr %s148, 8
          %s150 = scalar_lea.hbm %s0, %s149
          %s151 = sshll.u32 %s150, 4
          %s152 = int_to_ptr.hbm [resolvable:$true] %s151
          %s153 = sshll.u32 [#allocation2], 4
          %s154 = int_to_ptr.vmem [resolvable:$true] %s153
          %159 = dma.hbm_to_vmem [thread:$0]  %s152, 4096, %s154, [#allocation3], 512, 512, 32
        $region16: #{tpu_custom_call.1} parent=11 // pred_fallthru
          _
        // Predicated region
        $region17: #{tpu_custom_call.1} parent=11 // pred_check
          %p160 = pneg %p73
        $region18: #{tpu_custom_call.1} parent=11 // pred_check_branch
          %162 = sbr.rel (%p160) target = $region20
        $region19: #{tpu_custom_call.1} parent=11 // pred_region
          %164 = vsyncadd [#allocation6], 0
          %s165 = sshll.u32 %s1, 4
          %s166 = int_to_ptr.hbm [resolvable:$true] %s165
          %s167 = sshll.u32 [#allocation5], 4
          %s168 = int_to_ptr.vmem [resolvable:$true] %s167
          %173 = dma.hbm_to_vmem [thread:$0]  %s166, 8192, %s168, [#allocation6], 512, 512, 32
        $region20: #{tpu_custom_call.1} parent=11 // pred_fallthru
          _
      $region12: #{tpu_custom_call.1} parent=5 // pred_fallthru
        _
      %p174 = scmp.lt.s32.totalorder %s14, 2
      // Predicated region
      $region21: #{tpu_custom_call.1} parent=5 // pred_check
        %p175 = pneg %p174
      $region22: #{tpu_custom_call.1} parent=5 // pred_check_branch
        %177 = sbr.rel (%p175) target = $region24
      $region23: #{tpu_custom_call.1} parent=5 // pred_region
        // Predicated region
        $region25: #{tpu_custom_call.1} parent=23 // pred_check
          %p178 = pneg %p93
        $region26: #{tpu_custom_call.1} parent=23 // pred_check_branch
          %180 = sbr.rel (%p178) target = $region28
        $region27: #{tpu_custom_call.1} parent=23 // pred_region
          %s181 = sand.u32 %s14, 1
          %s182 = scalar_lea.sflag [#allocation3], %s181
          %s183 = sand.u32 %s83, 1
          %s184 = smul.addr %s183, 256
          %s185 = scalar_lea.vmem [#allocation7], %s184
          %s186 = smul.u32 32, %s22
          %188 = vsyncadd %s182, 0
          %s189 = smul.addr %s186, 8
          %s190 = scalar_lea.hbm %s2, %s189
          %s191 = sshll.u32 %s190, 4
          %s192 = int_to_ptr.hbm [resolvable:$true] %s191
          %s193 = sshll.u32 %s185, 4
          %s194 = int_to_ptr.vmem [resolvable:$true] %s193
          %199 = dma.hbm_to_vmem [thread:$0]  %s192, 4096, %s194, %s182, 128, 128, 8
        $region28: #{tpu_custom_call.1} parent=23 // pred_fallthru
          _
      $region24: #{tpu_custom_call.1} parent=5 // pred_fallthru
        _
      %p200 = scmp.le.s32.totalorder 1, %s14
      %p201 = scmp.lt.s32.totalorder %s14, 3
      %p202 = pnand %p200, %p201
      %p203 = pneg %p202
      // Predicated region
      $region29: #{tpu_custom_call.1} parent=5 // pred_check
        _
      $region30: #{tpu_custom_call.1} parent=5 // pred_check_branch
        %205 = sbr.rel (%p202) target = $region32
      $region31: #{tpu_custom_call.1} parent=5 // pred_region
        %s206 = ssub.s32 %s14, 1
        // Predicated region
        $region33: #{tpu_custom_call.1} parent=31 // pred_check
          %p207 = pneg %p52
        $region34: #{tpu_custom_call.1} parent=31 // pred_check_branch
          %209 = sbr.rel (%p207) target = $region36
        $region35: #{tpu_custom_call.1} parent=31 // pred_region
          %211 = dma.done [#allocation3], 4096
        $region36: #{tpu_custom_call.1} parent=31 // pred_fallthru
          _
        // Predicated region
        $region37: #{tpu_custom_call.1} parent=31 // pred_check
          %p212 = pneg %p73
        $region38: #{tpu_custom_call.1} parent=31 // pred_check_branch
          %214 = sbr.rel (%p212) target = $region40
        $region39: #{tpu_custom_call.1} parent=31 // pred_region
          %216 = dma.done [#allocation6], 8192
        $region40: #{tpu_custom_call.1} parent=31 // pred_fallthru
          _
        %s217 = sand.u32 %s19, 1
        %s218 = scalar_lea.sflag [#allocation3], %s217
        %s219 = sand.u32 %s86, 1
        %s220 = smul.addr %s219, 256
        %s221 = scalar_lea.vmem [#allocation7], %s220
        // Predicated region
        $region41: #{tpu_custom_call.1} parent=31 // pred_check
          %p222 = pneg %p99
        $region42: #{tpu_custom_call.1} parent=31 // pred_check_branch
          %224 = sbr.rel (%p222) target = $region44
        $region43: #{tpu_custom_call.1} parent=31 // pred_region
          %226 = dma.done %s218, 4096
        $region44: #{tpu_custom_call.1} parent=31 // pred_fallthru
          _
        %p227 = pneg %p52
        %p228 = pneg %p49
        %p229 = pneg %p73
        %p230 = pneg %p70
        %s231 = sand.u32 %s19, 1
        %s232 = scalar_lea.sflag [#allocation3], %s231
        %s233 = sand.u32 %s86, 1
        %s234 = smul.addr %s233, 256
        %s235 = scalar_lea.vmem [#allocation7], %s234
        %p236 = pneg %p99
        %p237 = pneg %p96
        %p238 = pneg %p127
        %p239 = pneg %p124
        %s240 = sand.u32 %s114, 1
        %s241 = scalar_lea.sflag [#allocation4], %s240
        %s242 = sand.u32 %s114, 1
        %s243 = smul.addr %s242, 128
        %s244 = scalar_lea.vmem [#allocation8], %s243
        %s245 = smul.u32 8, %s23
        %s246 = smul.u32 32, %s24
        %s247 = smul.u32 8, %s23
        %s248 = smul.u32 2, %s24
        %v249 = vld [vmem:[#allocation2] sm:$0xff]
        %v250 = vld [vmem:[#allocation2 + $0x8] sm:$0xff]
        %v251 = vld [vmem:[#allocation2 + $0x10] sm:$0xff]
        %v252 = vld [vmem:[#allocation2 + $0x18] sm:$0xff]
        %v253 = vld [vmem:[#allocation2 + $0x20] sm:$0xff]
        %v254 = vld [vmem:[#allocation2 + $0x28] sm:$0xff]
        %v255 = vld [vmem:[#allocation2 + $0x30] sm:$0xff]
        %v256 = vld [vmem:[#allocation2 + $0x38] sm:$0xff]
        %v257 = vld [vmem:[#allocation2 + $0x40] sm:$0xff]
        %v258 = vld [vmem:[#allocation2 + $0x48] sm:$0xff]
        %v259 = vld [vmem:[#allocation2 + $0x50] sm:$0xff]
        %v260 = vld [vmem:[#allocation2 + $0x58] sm:$0xff]
        %v261 = vld [vmem:[#allocation2 + $0x60] sm:$0xff]
        %v262 = vld [vmem:[#allocation2 + $0x68] sm:$0xff]
        %v263 = vld [vmem:[#allocation2 + $0x70] sm:$0xff]
        %v264 = vld [vmem:[#allocation2 + $0x78] sm:$0xff]
        %v265 = vld [vmem:[#allocation2 + $0x80] sm:$0xff]
        %v266 = vld [vmem:[#allocation2 + $0x88] sm:$0xff]
        %v267 = vld [vmem:[#allocation2 + $0x90] sm:$0xff]
        %v268 = vld [vmem:[#allocation2 + $0x98] sm:$0xff]
        %v269 = vld [vmem:[#allocation2 + $0xa0] sm:$0xff]
        %v270 = vld [vmem:[#allocation2 + $0xa8] sm:$0xff]
        %v271 = vld [vmem:[#allocation2 + $0xb0] sm:$0xff]
        %v272 = vld [vmem:[#allocation2 + $0xb8] sm:$0xff]
        %v273 = vld [vmem:[#allocation2 + $0xc0] sm:$0xff]
        %v274 = vld [vmem:[#allocation2 + $0xc8] sm:$0xff]
        %v275 = vld [vmem:[#allocation2 + $0xd0] sm:$0xff]
        %v276 = vld [vmem:[#allocation2 + $0xd8] sm:$0xff]
        %v277 = vld [vmem:[#allocation2 + $0xe0] sm:$0xff]
        %v278 = vld [vmem:[#allocation2 + $0xe8] sm:$0xff]
        %v279 = vld [vmem:[#allocation2 + $0xf0] sm:$0xff]
        %v280 = vld [vmem:[#allocation2 + $0xf8] sm:$0xff]
        %v281 = vpack.c.bf16 %v253, %v249
        %v282 = vpack.c.bf16 %v254, %v250
        %v283 = vpack.c.bf16 %v255, %v251
        %v284 = vpack.c.bf16 %v256, %v252
        %v285 = vpack.c.bf16 %v261, %v257
        %v286 = vpack.c.bf16 %v262, %v258
        %v287 = vpack.c.bf16 %v263, %v259
        %v288 = vpack.c.bf16 %v264, %v260
        %v289 = vpack.c.bf16 %v269, %v265
        %v290 = vpack.c.bf16 %v270, %v266
        %v291 = vpack.c.bf16 %v271, %v267
        %v292 = vpack.c.bf16 %v272, %v268
        %v293 = vpack.c.bf16 %v277, %v273
        %v294 = vpack.c.bf16 %v278, %v274
        %v295 = vpack.c.bf16 %v279, %v275
        %v296 = vpack.c.bf16 %v280, %v276
        %v297 = vld [vmem:[#allocation5] sm:$0xff]
        %v298 = vld [vmem:[#allocation5 + $0x8] sm:$0xff]
        %v299 = vld [vmem:[#allocation5 + $0x10] sm:$0xff]
        %v300 = vld [vmem:[#allocation5 + $0x18] sm:$0xff]
        %v301 = vld [vmem:[#allocation5 + $0x20] sm:$0xff]
        %v302 = vld [vmem:[#allocation5 + $0x28] sm:$0xff]
        %v303 = vld [vmem:[#allocation5 + $0x30] sm:$0xff]
        %v304 = vld [vmem:[#allocation5 + $0x38] sm:$0xff]
        %v305 = vld [vmem:[#allocation5 + $0x40] sm:$0xff]
        %v306 = vld [vmem:[#allocation5 + $0x48] sm:$0xff]
        %v307 = vld [vmem:[#allocation5 + $0x50] sm:$0xff]
        %v308 = vld [vmem:[#allocation5 + $0x58] sm:$0xff]
        %v309 = vld [vmem:[#allocation5 + $0x60] sm:$0xff]
        %v310 = vld [vmem:[#allocation5 + $0x68] sm:$0xff]
        %v311 = vld [vmem:[#allocation5 + $0x70] sm:$0xff]
        %v312 = vld [vmem:[#allocation5 + $0x78] sm:$0xff]
        %v313 = vld [vmem:[#allocation5 + $0x80] sm:$0xff]
        %v314 = vld [vmem:[#allocation5 + $0x88] sm:$0xff]
        %v315 = vld [vmem:[#allocation5 + $0x90] sm:$0xff]
        %v316 = vld [vmem:[#allocation5 + $0x98] sm:$0xff]
        %v317 = vld [vmem:[#allocation5 + $0xa0] sm:$0xff]
        %v318 = vld [vmem:[#allocation5 + $0xa8] sm:$0xff]
        %v319 = vld [vmem:[#allocation5 + $0xb0] sm:$0xff]
        %v320 = vld [vmem:[#allocation5 + $0xb8] sm:$0xff]
        %v321 = vld [vmem:[#allocation5 + $0xc0] sm:$0xff]
        %v322 = vld [vmem:[#allocation5 + $0xc8] sm:$0xff]
        %v323 = vld [vmem:[#allocation5 + $0xd0] sm:$0xff]
        %v324 = vld [vmem:[#allocation5 + $0xd8] sm:$0xff]
        %v325 = vld [vmem:[#allocation5 + $0xe0] sm:$0xff]
        %v326 = vld [vmem:[#allocation5 + $0xe8] sm:$0xff]
        %v327 = vld [vmem:[#allocation5 + $0xf0] sm:$0xff]
        %v328 = vld [vmem:[#allocation5 + $0xf8] sm:$0xff]
        %v329 = vld [vmem:[#allocation5 + $0x100] sm:$0xff]
        %v330 = vld [vmem:[#allocation5 + $0x108] sm:$0xff]
        %v331 = vld [vmem:[#allocation5 + $0x110] sm:$0xff]
        %v332 = vld [vmem:[#allocation5 + $0x118] sm:$0xff]
        %v333 = vld [vmem:[#allocation5 + $0x120] sm:$0xff]
        %v334 = vld [vmem:[#allocation5 + $0x128] sm:$0xff]
        %v335 = vld [vmem:[#allocation5 + $0x130] sm:$0xff]
        %v336 = vld [vmem:[#allocation5 + $0x138] sm:$0xff]
        %v337 = vld [vmem:[#allocation5 + $0x140] sm:$0xff]
        %v338 = vld [vmem:[#allocation5 + $0x148] sm:$0xff]
        %v339 = vld [vmem:[#allocation5 + $0x150] sm:$0xff]
        %v340 = vld [vmem:[#allocation5 + $0x158] sm:$0xff]
        %v341 = vld [vmem:[#allocation5 + $0x160] sm:$0xff]
        %v342 = vld [vmem:[#allocation5 + $0x168] sm:$0xff]
        %v343 = vld [vmem:[#allocation5 + $0x170] sm:$0xff]
        %v344 = vld [vmem:[#allocation5 + $0x178] sm:$0xff]
        %v345 = vld [vmem:[#allocation5 + $0x180] sm:$0xff]
        %v346 = vld [vmem:[#allocation5 + $0x188] sm:$0xff]
        %v347 = vld [vmem:[#allocation5 + $0x190] sm:$0xff]
        %v348 = vld [vmem:[#allocation5 + $0x198] sm:$0xff]
        %v349 = vld [vmem:[#allocation5 + $0x1a0] sm:$0xff]
        %v350 = vld [vmem:[#allocation5 + $0x1a8] sm:$0xff]
        %v351 = vld [vmem:[#allocation5 + $0x1b0] sm:$0xff]
        %v352 = vld [vmem:[#allocation5 + $0x1b8] sm:$0xff]
        %v353 = vld [vmem:[#allocation5 + $0x1c0] sm:$0xff]
        %v354 = vld [vmem:[#allocation5 + $0x1c8] sm:$0xff]
        %v355 = vld [vmem:[#allocation5 + $0x1d0] sm:$0xff]
        %v356 = vld [vmem:[#allocation5 + $0x1d8] sm:$0xff]
        %v357 = vld [vmem:[#allocation5 + $0x1e0] sm:$0xff]
        %v358 = vld [vmem:[#allocation5 + $0x1e8] sm:$0xff]
        %v359 = vld [vmem:[#allocation5 + $0x1f0] sm:$0xff]
        %v360 = vld [vmem:[#allocation5 + $0x1f8] sm:$0xff]
        %v361 = vpack.c.bf16 %v301, %v297
        %v362 = vpack.c.bf16 %v302, %v298
        %v363 = vpack.c.bf16 %v303, %v299
        %v364 = vpack.c.bf16 %v304, %v300
        %v365 = vpack.c.bf16 %v309, %v305
        %v366 = vpack.c.bf16 %v310, %v306
        %v367 = vpack.c.bf16 %v311, %v307
        %v368 = vpack.c.bf16 %v312, %v308
        %v369 = vpack.c.bf16 %v317, %v313
        %v370 = vpack.c.bf16 %v318, %v314
        %v371 = vpack.c.bf16 %v319, %v315
        %v372 = vpack.c.bf16 %v320, %v316
        %v373 = vpack.c.bf16 %v325, %v321
        %v374 = vpack.c.bf16 %v326, %v322
        %v375 = vpack.c.bf16 %v327, %v323
        %v376 = vpack.c.bf16 %v328, %v324
        %v377 = vpack.c.bf16 %v333, %v329
        %v378 = vpack.c.bf16 %v334, %v330
        %v379 = vpack.c.bf16 %v335, %v331
        %v380 = vpack.c.bf16 %v336, %v332
        %v381 = vpack.c.bf16 %v341, %v337
        %v382 = vpack.c.bf16 %v342, %v338
        %v383 = vpack.c.bf16 %v343, %v339
        %v384 = vpack.c.bf16 %v344, %v340
        %v385 = vpack.c.bf16 %v349, %v345
        %v386 = vpack.c.bf16 %v350, %v346
        %v387 = vpack.c.bf16 %v351, %v347
        %v388 = vpack.c.bf16 %v352, %v348
        %v389 = vpack.c.bf16 %v357, %v353
        %v390 = vpack.c.bf16 %v358, %v354
        %v391 = vpack.c.bf16 %v359, %v355
        %v392 = vpack.c.bf16 %v360, %v356
        %393 = vmatpush.bf16.xpose.msra.mxu0 %v389
        %394 = vmatpush.bf16.xpose.msra.mxu0 %v385
        %395 = vmatpush.bf16.xpose.msra.mxu0 %v381
        %396 = vmatpush.bf16.xpose.msra.mxu0 %v377
        %397 = vmatpush.bf16.xpose.msra.mxu0 %v373
        %398 = vmatpush.bf16.xpose.msra.mxu0 %v369
        %399 = vmatpush.bf16.xpose.msra.mxu0 %v365
        %400 = vmatpush.bf16.xpose.msra.mxu0 %v361
        %401 = vmatmul.bf16.gmra.mxu0 %v281
        %v402 = vpop.f32.mrf.mxu0
        %v403 = vadd.f32 0.0, %v402
        %v404 = vpop.f32.mrf.mxu0
        %v405 = vadd.f32 0.0, %v404
        %406 = vmatmul.bf16.gmra.mxu0 %v285
        %v407 = vpop.f32.mrf.mxu0
        %v408 = vadd.f32 0.0, %v407
        %v409 = vpop.f32.mrf.mxu0
        %v410 = vadd.f32 0.0, %v409
        %411 = vmatmul.bf16.gmra.mxu0 %v289
        %v412 = vpop.f32.mrf.mxu0
        %v413 = vadd.f32 0.0, %v412
        %v414 = vpop.f32.mrf.mxu0
        %v415 = vadd.f32 0.0, %v414
        %416 = vmatmul.bf16.gmra.mxu0 %v293
        %v417 = vpop.f32.mrf.mxu0
        %v418 = vadd.f32 0.0, %v417
        %v419 = vpop.f32.mrf.mxu0
        %v420 = vadd.f32 0.0, %v419
        %421 = vdwg.mxu0
        %422 = vmatpush.bf16.xpose.msra.mxu0 %v390
        %423 = vmatpush.bf16.xpose.msra.mxu0 %v386
        %424 = vmatpush.bf16.xpose.msra.mxu0 %v382
        %425 = vmatpush.bf16.xpose.msra.mxu0 %v378
        %426 = vmatpush.bf16.xpose.msra.mxu0 %v374
        %427 = vmatpush.bf16.xpose.msra.mxu0 %v370
        %428 = vmatpush.bf16.xpose.msra.mxu0 %v366
        %429 = vmatpush.bf16.xpose.msra.mxu0 %v362
        %430 = vmatmul.bf16.gmra.mxu0 %v282
        %v431 = vpop.f32.mrf.mxu0
        %v432 = vadd.f32 %v403, %v431
        %v433 = vpop.f32.mrf.mxu0
        %v434 = vadd.f32 %v405, %v433
        %435 = vmatmul.bf16.gmra.mxu0 %v286
        %v436 = vpop.f32.mrf.mxu0
        %v437 = vadd.f32 %v408, %v436
        %v438 = vpop.f32.mrf.mxu0
        %v439 = vadd.f32 %v410, %v438
        %440 = vmatmul.bf16.gmra.mxu0 %v290
        %v441 = vpop.f32.mrf.mxu0
        %v442 = vadd.f32 %v413, %v441
        %v443 = vpop.f32.mrf.mxu0
        %v444 = vadd.f32 %v415, %v443
        %445 = vmatmul.bf16.gmra.mxu0 %v294
        %v446 = vpop.f32.mrf.mxu0
        %v447 = vadd.f32 %v418, %v446
        %v448 = vpop.f32.mrf.mxu0
        %v449 = vadd.f32 %v420, %v448
        %450 = vdwg.mxu0
        %451 = vmatpush.bf16.xpose.msra.mxu0 %v391
        %452 = vmatpush.bf16.xpose.msra.mxu0 %v387
        %453 = vmatpush.bf16.xpose.msra.mxu0 %v383
        %454 = vmatpush.bf16.xpose.msra.mxu0 %v379
        %455 = vmatpush.bf16.xpose.msra.mxu0 %v375
        %456 = vmatpush.bf16.xpose.msra.mxu0 %v371
        %457 = vmatpush.bf16.xpose.msra.mxu0 %v367
        %458 = vmatpush.bf16.xpose.msra.mxu0 %v363
        %459 = vmatmul.bf16.gmra.mxu0 %v283
        %v460 = vpop.f32.mrf.mxu0
        %v461 = vadd.f32 %v432, %v460
        %v462 = vpop.f32.mrf.mxu0
        %v463 = vadd.f32 %v434, %v462
        %464 = vmatmul.bf16.gmra.mxu0 %v287
        %v465 = vpop.f32.mrf.mxu0
        %v466 = vadd.f32 %v437, %v465
        %v467 = vpop.f32.mrf.mxu0
        %v468 = vadd.f32 %v439, %v467
        %469 = vmatmul.bf16.gmra.mxu0 %v291
        %v470 = vpop.f32.mrf.mxu0
        %v471 = vadd.f32 %v442, %v470
        %v472 = vpop.f32.mrf.mxu0
        %v473 = vadd.f32 %v444, %v472
        %474 = vmatmul.bf16.gmra.mxu0 %v295
        %v475 = vpop.f32.mrf.mxu0
        %v476 = vadd.f32 %v447, %v475
        %v477 = vpop.f32.mrf.mxu0
        %v478 = vadd.f32 %v449, %v477
        %479 = vdwg.mxu0
        %480 = vmatpush.bf16.xpose.msra.mxu0 %v392
        %481 = vmatpush.bf16.xpose.msra.mxu0 %v388
        %482 = vmatpush.bf16.xpose.msra.mxu0 %v384
        %483 = vmatpush.bf16.xpose.msra.mxu0 %v380
        %484 = vmatpush.bf16.xpose.msra.mxu0 %v376
        %485 = vmatpush.bf16.xpose.msra.mxu0 %v372
        %486 = vmatpush.bf16.xpose.msra.mxu0 %v368
        %487 = vmatpush.bf16.xpose.msra.mxu0 %v364
        %488 = vmatmul.bf16.gmra.mxu0 %v284
        %v489 = vpop.f32.mrf.mxu0
        %v490 = vadd.f32 %v461, %v489
        %v491 = vpop.f32.mrf.mxu0
        %v492 = vadd.f32 %v463, %v491
        %493 = vmatmul.bf16.gmra.mxu0 %v288
        %v494 = vpop.f32.mrf.mxu0
        %v495 = vadd.f32 %v466, %v494
        %v496 = vpop.f32.mrf.mxu0
        %v497 = vadd.f32 %v468, %v496
        %498 = vmatmul.bf16.gmra.mxu0 %v292
        %v499 = vpop.f32.mrf.mxu0
        %v500 = vadd.f32 %v471, %v499
        %v501 = vpop.f32.mrf.mxu0
        %v502 = vadd.f32 %v473, %v501
        %503 = vmatmul.bf16.gmra.mxu0 %v296
        %v504 = vpop.f32.mrf.mxu0
        %v505 = vadd.f32 %v476, %v504
        %v506 = vpop.f32.mrf.mxu0
        %v507 = vadd.f32 %v478, %v506
        %508 = vdwg.mxu0
        %v509 = vmax.f32 %v490, 0.0
        %v510 = vmax.f32 %v492, 0.0
        %v511 = vmax.f32 %v495, 0.0
        %v512 = vmax.f32 %v497, 0.0
        %v513 = vmax.f32 %v500, 0.0
        %v514 = vmax.f32 %v502, 0.0
        %v515 = vmax.f32 %v505, 0.0
        %v516 = vmax.f32 %v507, 0.0
        %v517 = vld [vmem:[%s221] sm:$0xff]
        %v518 = vld [vmem:[%s221 + $0x8] sm:$0xff]
        %v519 = vld [vmem:[%s221 + $0x10] sm:$0xff]
        %v520 = vld [vmem:[%s221 + $0x18] sm:$0xff]
        %v521 = vld [vmem:[%s221 + $0x20] sm:$0xff]
        %v522 = vld [vmem:[%s221 + $0x28] sm:$0xff]
        %v523 = vld [vmem:[%s221 + $0x30] sm:$0xff]
        %v524 = vld [vmem:[%s221 + $0x38] sm:$0xff]
        %v525 = vld [vmem:[%s221 + $0x40] sm:$0xff]
        %v526 = vld [vmem:[%s221 + $0x48] sm:$0xff]
        %v527 = vld [vmem:[%s221 + $0x50] sm:$0xff]
        %v528 = vld [vmem:[%s221 + $0x58] sm:$0xff]
        %v529 = vld [vmem:[%s221 + $0x60] sm:$0xff]
        %v530 = vld [vmem:[%s221 + $0x68] sm:$0xff]
        %v531 = vld [vmem:[%s221 + $0x70] sm:$0xff]
        %v532 = vld [vmem:[%s221 + $0x78] sm:$0xff]
        %v533 = vld [vmem:[%s221 + $0x80] sm:$0xff]
        %v534 = vld [vmem:[%s221 + $0x88] sm:$0xff]
        %v535 = vld [vmem:[%s221 + $0x90] sm:$0xff]
        %v536 = vld [vmem:[%s221 + $0x98] sm:$0xff]
        %v537 = vld [vmem:[%s221 + $0xa0] sm:$0xff]
        %v538 = vld [vmem:[%s221 + $0xa8] sm:$0xff]
        %v539 = vld [vmem:[%s221 + $0xb0] sm:$0xff]
        %v540 = vld [vmem:[%s221 + $0xb8] sm:$0xff]
        %v541 = vld [vmem:[%s221 + $0xc0] sm:$0xff]
        %v542 = vld [vmem:[%s221 + $0xc8] sm:$0xff]
        %v543 = vld [vmem:[%s221 + $0xd0] sm:$0xff]
        %v544 = vld [vmem:[%s221 + $0xd8] sm:$0xff]
        %v545 = vld [vmem:[%s221 + $0xe0] sm:$0xff]
        %v546 = vld [vmem:[%s221 + $0xe8] sm:$0xff]
        %v547 = vld [vmem:[%s221 + $0xf0] sm:$0xff]
        %v548 = vld [vmem:[%s221 + $0xf8] sm:$0xff]
        %v549 = vpack.c.bf16 %v518, %v517
        %v550 = vpack.c.bf16 %v520, %v519
        %v551 = vpack.c.bf16 %v522, %v521
        %v552 = vpack.c.bf16 %v524, %v523
        %v553 = vpack.c.bf16 %v526, %v525
        %v554 = vpack.c.bf16 %v528, %v527
        %v555 = vpack.c.bf16 %v530, %v529
        %v556 = vpack.c.bf16 %v532, %v531
        %v557 = vpack.c.bf16 %v534, %v533
        %v558 = vpack.c.bf16 %v536, %v535
        %v559 = vpack.c.bf16 %v538, %v537
        %v560 = vpack.c.bf16 %v540, %v539
        %v561 = vpack.c.bf16 %v542, %v541
        %v562 = vpack.c.bf16 %v544, %v543
        %v563 = vpack.c.bf16 %v546, %v545
        %v564 = vpack.c.bf16 %v548, %v547
        %v565 = vpack.c.bf16 %v510, %v509
        %v566 = vpack.c.bf16 %v512, %v511
        %v567 = vpack.c.bf16 %v514, %v513
        %v568 = vpack.c.bf16 %v516, %v515
        %569 = vmatpush.bf16.xpose.msra.mxu0 %v556
        %570 = vmatpush.bf16.xpose.msra.mxu0 %v555
        %571 = vmatpush.bf16.xpose.msra.mxu0 %v554
        %572 = vmatpush.bf16.xpose.msra.mxu0 %v553
        %573 = vmatpush.bf16.xpose.msra.mxu0 %v552
        %574 = vmatpush.bf16.xpose.msra.mxu0 %v551
        %575 = vmatpush.bf16.xpose.msra.mxu0 %v550
        %576 = vmatpush.bf16.xpose.msra.mxu0 %v549
        %577 = vmatmul.bf16.gmra.mxu0 %v565
        %v578 = vpop.f32.mrf.mxu0
        %v579 = vadd.f32 0.0, %v578
        %v580 = vpop.f32.mrf.mxu0
        %v581 = vadd.f32 0.0, %v580
        %582 = vmatmul.bf16.gmra.mxu0 %v566
        %v583 = vpop.f32.mrf.mxu0
        %v584 = vadd.f32 0.0, %v583
        %v585 = vpop.f32.mrf.mxu0
        %v586 = vadd.f32 0.0, %v585
        %587 = vmatmul.bf16.gmra.mxu0 %v567
        %v588 = vpop.f32.mrf.mxu0
        %v589 = vadd.f32 0.0, %v588
        %v590 = vpop.f32.mrf.mxu0
        %v591 = vadd.f32 0.0, %v590
        %592 = vmatmul.bf16.gmra.mxu0 %v568
        %v593 = vpop.f32.mrf.mxu0
        %v594 = vadd.f32 0.0, %v593
        %v595 = vpop.f32.mrf.mxu0
        %v596 = vadd.f32 0.0, %v595
        %597 = vdwg.mxu0
        %598 = vmatpush.bf16.xpose.msra.mxu0 %v564
        %599 = vmatpush.bf16.xpose.msra.mxu0 %v563
        %600 = vmatpush.bf16.xpose.msra.mxu0 %v562
        %601 = vmatpush.bf16.xpose.msra.mxu0 %v561
        %602 = vmatpush.bf16.xpose.msra.mxu0 %v560
        %603 = vmatpush.bf16.xpose.msra.mxu0 %v559
        %604 = vmatpush.bf16.xpose.msra.mxu0 %v558
        %605 = vmatpush.bf16.xpose.msra.mxu0 %v557
        %606 = vmatmul.bf16.gmra.mxu0 %v565
        %v607 = vpop.f32.mrf.mxu0
        %v608 = vadd.f32 0.0, %v607
        %v609 = vpop.f32.mrf.mxu0
        %v610 = vadd.f32 0.0, %v609
        %611 = vmatmul.bf16.gmra.mxu0 %v566
        %v612 = vpop.f32.mrf.mxu0
        %v613 = vadd.f32 0.0, %v612
        %v614 = vpop.f32.mrf.mxu0
        %v615 = vadd.f32 0.0, %v614
        %616 = vmatmul.bf16.gmra.mxu0 %v567
        %v617 = vpop.f32.mrf.mxu0
        %v618 = vadd.f32 0.0, %v617
        %v619 = vpop.f32.mrf.mxu0
        %v620 = vadd.f32 0.0, %v619
        %621 = vmatmul.bf16.gmra.mxu0 %v568
        %v622 = vpop.f32.mrf.mxu0
        %v623 = vadd.f32 0.0, %v622
        %v624 = vpop.f32.mrf.mxu0
        %v625 = vadd.f32 0.0, %v624
        %626 = vdwg.mxu0
        %v627 = vmax.f32 %v579, 0.0
        %v628 = vmax.f32 %v608, 0.0
        %v629 = vmax.f32 %v581, 0.0
        %v630 = vmax.f32 %v610, 0.0
        %v631 = vmax.f32 %v584, 0.0
        %v632 = vmax.f32 %v613, 0.0
        %v633 = vmax.f32 %v586, 0.0
        %v634 = vmax.f32 %v615, 0.0
        %v635 = vmax.f32 %v589, 0.0
        %v636 = vmax.f32 %v618, 0.0
        %v637 = vmax.f32 %v591, 0.0
        %v638 = vmax.f32 %v620, 0.0
        %v639 = vmax.f32 %v594, 0.0
        %v640 = vmax.f32 %v623, 0.0
        %v641 = vmax.f32 %v596, 0.0
        %v642 = vmax.f32 %v625, 0.0
        %643 = vst [vmem:[%s244] sm:$0xff] %v627
        %644 = vst [vmem:[%s244 + $0x8] sm:$0xff] %v628
        %645 = vst [vmem:[%s244 + $0x10] sm:$0xff] %v629
        %646 = vst [vmem:[%s244 + $0x18] sm:$0xff] %v630
        %647 = vst [vmem:[%s244 + $0x20] sm:$0xff] %v631
        %648 = vst [vmem:[%s244 + $0x28] sm:$0xff] %v632
        %649 = vst [vmem:[%s244 + $0x30] sm:$0xff] %v633
        %650 = vst [vmem:[%s244 + $0x38] sm:$0xff] %v634
        %651 = vst [vmem:[%s244 + $0x40] sm:$0xff] %v635
        %652 = vst [vmem:[%s244 + $0x48] sm:$0xff] %v636
        %653 = vst [vmem:[%s244 + $0x50] sm:$0xff] %v637
        %654 = vst [vmem:[%s244 + $0x58] sm:$0xff] %v638
        %655 = vst [vmem:[%s244 + $0x60] sm:$0xff] %v639
        %656 = vst [vmem:[%s244 + $0x68] sm:$0xff] %v640
        %657 = vst [vmem:[%s244 + $0x70] sm:$0xff] %v641
        %658 = vst [vmem:[%s244 + $0x78] sm:$0xff] %v642
        %s659 = sand.u32 %s114, 1
        %s660 = scalar_lea.sflag [#allocation4], %s659
        %s661 = sand.u32 %s114, 1
        %s662 = smul.addr %s661, 128
        %s663 = scalar_lea.vmem [#allocation8], %s662
        // Predicated region
        $region45: #{tpu_custom_call.1} parent=31 // pred_check
          %p664 = pneg %p124
        $region46: #{tpu_custom_call.1} parent=31 // pred_check_branch
          %666 = sbr.rel (%p664) target = $region48
        $region47: #{tpu_custom_call.1} parent=31 // pred_region
          %s667 = smul.u32 8, %s23
          %s668 = smul.u32 2, %s24
          %670 = vsyncadd %s660, 0
          %s671 = smul.addr %s667, 4
          %s672 = sadd.s32 %s668, %s671
          %s673 = smul.addr %s672, 8
          %s674 = scalar_lea.hbm %s3, %s673
          %s675 = sshll.u32 %s663, 4
          %s676 = int_to_ptr.vmem [resolvable:$true] %s675
          %s677 = sshll.u32 %s674, 4
          %s678 = int_to_ptr.hbm [resolvable:$true] %s677
          %683 = dma.vmem_to_hbm [thread:$0]  %s676, 2048, %s678, %s660, 256, 512, 16
        $region48: #{tpu_custom_call.1} parent=31 // pred_fallthru
          _
      $region32: #{tpu_custom_call.1} parent=5 // pred_fallthru
        _
      %p684 = scmp.le.s32.totalorder 2, %s14
      // Predicated region
      $region49: #{tpu_custom_call.1} parent=5 // pred_check
        %p685 = pneg %p684
      $region50: #{tpu_custom_call.1} parent=5 // pred_check_branch
        %687 = sbr.rel (%p685) target = $region52
      $region51: #{tpu_custom_call.1} parent=5 // pred_region
        %s688 = ssub.s32 %s14, 2
        // Predicated region
        $region53: #{tpu_custom_call.1} parent=51 // pred_check
          %p689 = pneg %p130
        $region54: #{tpu_custom_call.1} parent=51 // pred_check_branch
          %691 = sbr.rel (%p689) target = $region56
        $region55: #{tpu_custom_call.1} parent=51 // pred_region
          %s692 = sand.u32 %s115, 1
          %s693 = scalar_lea.sflag [#allocation4], %s692
          %s694 = sand.u32 %s115, 1
          %s695 = smul.addr %s694, 128
          %s696 = scalar_lea.vmem [#allocation8], %s695
          %698 = dma.done %s693, 2048
        $region56: #{tpu_custom_call.1} parent=51 // pred_fallthru
          _
      $region52: #{tpu_custom_call.1} parent=5 // pred_fallthru
        _
    $region6: #{tpu_custom_call.1} parent=1 // loop_footer
      %s18 = sadd.s32 1, %s14
    $region7: #{tpu_custom_call.1} parent=1 // loop_footer_branch
      %13 = sbr.rel target = $region3
    $region8: #{tpu_custom_call.1} parent=1 // loop_exit
      _
    %699 = vsyncpa [#allocation3], 1
    %s700 = scalar_lea.sflag [#allocation3], 1
    %701 = vsyncpa %s700, 1
    %702 = vsyncpa [#allocation6], 1
    %703 = vsyncpa [#allocation4], 1
    %s704 = scalar_lea.sflag [#allocation4], 1
    %705 = vsyncpa %s704, 1

// kernel: tpu_custom_call.1
$region0: #{tpu_custom_call.1}
  #allocation0 [shape = 'u32[]', space=smem, size = 0x4, offset = 0x4, fixed_abs, tag = 'smem constant byte address 0x4 - core index']
  #allocation1 [shape = 'u32[72,128]{1,0:T(1,128)}', space=vmem, size = 0x9000, scoped, tag = 'internal scratch']
  %s0 = inlined_call_operand.hbm [shape: f32[64,512], index: 0, kind: input, shape index: {}]
  %s1 = inlined_call_operand.hbm [shape: f32[128,512], index: 1, kind: input, shape index: {}]
  %s2 = inlined_call_operand.hbm [shape: f32[512,128], index: 2, kind: input, shape index: {}]
  %s3 = inlined_call_operand.hbm [shape: f32[64,512], index: 3, kind: output, shape index: {}]
  %s4 = sld [smem:[#allocation0]]
  $region57: #{tpu_custom_call.1} parent=0
    _
  %s6 = ssub.s32 1, %s4
  %s7 = scalar_select 0, %s6, %s4
  $region1: #{tpu_custom_call.1} parent=0
    #allocation2 [shape = 'u8[131072]{0}', space=vmem, size = 0x20000, scoped, tag = 'input window, operand 0, single buffered']
    #allocation3 [shape = 's32[2]{0}', space=sflag, size = 0x8, scoped, tag = 'scoped memory for tpu_custom_call.1']
    #allocation4 [shape = 's32[2]{0}', space=sflag, size = 0x8, scoped, tag = 'scoped memory for tpu_custom_call.1']
    #allocation5 [shape = 'u8[262144]{0}', space=vmem, size = 0x40000, scoped, tag = 'input window, operand 1, single buffered']
    #allocation6 [shape = 's32[1]{0}', space=sflag, size = 0x4, scoped, tag = 'scoped memory for tpu_custom_call.1']
    #allocation7 [shape = 'u8[262144]{0}', space=vmem, size = 0x40000, scoped, tag = 'input window, operand 2']
    #allocation8 [shape = 'u8[131072]{0}', space=vmem, size = 0x20000, scoped, tag = 'output window, operand 0']
    %8 = vsyncpa [#allocation3], 0
    %9 = vsyncpa [#allocation6], 0
    %10 = vsyncpa [#allocation4], 0
    %s11 = scalar_lea.sflag [#allocation4], 1
    %12 = vsyncpa %s11, 0
    loop: start=0, step=1, limit=4
    $region2: #{tpu_custom_call.1} parent=1 // loop_pre_header
      _
    $region3: #{tpu_custom_call.1} parent=1 // loop_header
      %s14 = sphi 0, %s18
      %p15 = scmp.ge.s32.totalorder %s14, 4
      %s21 = sphi 0, %s33
      %s22 = sphi 0, %s29
      %s23 = sphi 0, %s21
      %s24 = sphi 0, %s22
      %s25 = sphi 0, %s23
      %s26 = sphi 0, %s24
      %s36 = sphi 0, %s38
      %s39 = sphi 0, %s36
      %s40 = sphi 0, %s39
      %s56 = sphi 0, %s40
      %s60 = sphi 0, %s60
      %s62 = sphi 0, %s60
      %s63 = sphi 0, %s62
      %s77 = sphi 0, %s63
      %s83 = sphi 0, %s85
      %s86 = sphi 0, %s83
      %s87 = sphi 0, %s86
      %s103 = sphi 0, %s87
      %s111 = sphi 0, %s113
      %s114 = sphi 0, %s111
      %s115 = sphi 0, %s114
      %s131 = sphi 0, %s115
    $region4: #{tpu_custom_call.1} parent=1 // loop_header_branch
      %17 = sbr.rel (%p15) target = $region8
    $region5: #{tpu_custom_call.1} parent=1 // loop_body
      %s19 = ssub.s32 %s14, 1
      %s20 = ssub.s32 %s14, 2
      %s27 = sadd.s32 1, %s22
      %p28 = scmp.ge.s32.totalorder %s27, 2
      %s29 = scalar_select %p28, 0, %s27
      %s30 = sadd.s32 1, %s21
      %s31 = scalar_select %p28, %s30, %s21
      %p32 = scmp.ge.s32.totalorder %s31, 1
      %s33 = scalar_select %p32, 0, %s31
      %s34 = ssub.s32 %s21, %s33
      %p35 = scmp.eq.s32.totalorder %s34, 0
      %s37 = sadd.s32 %s36, 1
      %s38 = scalar_select %p35, %s36, %s37
      %p41 = pneg %p35
      %p42 = scmp.eq.s32.totalorder %s14, 1
      %p43 = por %p41, %p42
      %p44 = scmp.ne.s32.totalorder %s36, %s39
      %p45 = scmp.eq.s32.totalorder %s14, 0
      %p46 = por %p44, %p45
      %p47 = scmp.ne.s32.totalorder %s36, %s39
      %p48 = scmp.eq.s32.totalorder %s19, 1
      %p49 = por %p47, %p48
      %p50 = scmp.ne.s32.totalorder %s39, %s40
      %p51 = scmp.eq.s32.totalorder %s19, 0
      %p52 = por %p50, %p51
      %p53 = scmp.ne.s32.totalorder %s39, %s40
      %p54 = scmp.eq.s32.totalorder %s20, 1
      %p55 = por %p53, %p54
      %p57 = scmp.ne.s32.totalorder %s40, %s56
      %p58 = scmp.eq.s32.totalorder %s20, 0
      %p59 = por %p57, %p58
      %s61 = sadd.s32 %s60, 1
      %p64 = scmp.eq.s32.totalorder %s14, 1
      %p65 = scmp.ne.s32.totalorder %s60, %s62
      %p66 = scmp.eq.s32.totalorder %s14, 0
      %p67 = por %p65, %p66
      %p68 = scmp.ne.s32.totalorder %s60, %s62
      %p69 = scmp.eq.s32.totalorder %s19, 1
      %p70 = por %p68, %p69
      %p71 = scmp.ne.s32.totalorder %s62, %s63
      %p72 = scmp.eq.s32.totalorder %s19, 0
      %p73 = por %p71, %p72
      %p74 = scmp.ne.s32.totalorder %s62, %s63
      %p75 = scmp.eq.s32.totalorder %s20, 1
      %p76 = por %p74, %p75
      %p78 = scmp.ne.s32.totalorder %s63, %s77
      %p79 = scmp.eq.s32.totalorder %s20, 0
      %p80 = por %p78, %p79
      %s81 = ssub.s32 %s22, %s29
      %p82 = scmp.eq.s32.totalorder %s81, 0
      %s84 = sadd.s32 %s83, 1
      %s85 = scalar_select %p82, %s83, %s84
      %p88 = pneg %p82
      %p89 = scmp.eq.s32.totalorder %s14, 1
      %p90 = por %p88, %p89
      %p91 = scmp.ne.s32.totalorder %s83, %s86
      %p92 = scmp.eq.s32.totalorder %s14, 0
      %p93 = por %p91, %p92
      %p94 = scmp.ne.s32.totalorder %s83, %s86
      %p95 = scmp.eq.s32.totalorder %s19, 1
      %p96 = por %p94, %p95
      %p97 = scmp.ne.s32.totalorder %s86, %s87
      %p98 = scmp.eq.s32.totalorder %s19, 0
      %p99 = por %p97, %p98
      %p100 = scmp.ne.s32.totalorder %s86, %s87
      %p101 = scmp.eq.s32.totalorder %s20, 1
      %p102 = por %p100, %p101
      %p104 = scmp.ne.s32.totalorder %s87, %s103
      %p105 = scmp.eq.s32.totalorder %s20, 0
      %p106 = por %p104, %p105
      %s107 = ssub.s32 %s21, %s33
      %s108 = ssub.s32 %s22, %s29
      %s109 = sor.u32 %s107, %s108
      %p110 = scmp.eq.s32.totalorder %s109, 0
      %s112 = sadd.s32 %s111, 1
      %s113 = scalar_select %p110, %s111, %s112
      %p116 = pneg %p110
      %p117 = scmp.eq.s32.totalorder %s14, 1
      %p118 = por %p116, %p117
      %p119 = scmp.ne.s32.totalorder %s111, %s114
      %p120 = scmp.eq.s32.totalorder %s14, 0
      %p121 = por %p119, %p120
      %p122 = scmp.ne.s32.totalorder %s111, %s114
      %p123 = scmp.eq.s32.totalorder %s19, 1
      %p124 = por %p122, %p123
      %p125 = scmp.ne.s32.totalorder %s114, %s115
      %p126 = scmp.eq.s32.totalorder %s19, 0
      %p127 = por %p125, %p126
      %p128 = scmp.ne.s32.totalorder %s114, %s115
      %p129 = scmp.eq.s32.totalorder %s20, 1
      %p130 = por %p128, %p129
      %p132 = scmp.ne.s32.totalorder %s115, %s131
      %p133 = scmp.eq.s32.totalorder %s20, 0
      %p134 = por %p132, %p133
      %p135 = scmp.le.s32.totalorder 1, %s14
      %p136 = scmp.lt.s32.totalorder %s14, 3
      %p137 = pnand %p135, %p136
      %p138 = pneg %p137
      // Predicated region
      $region9: #{tpu_custom_call.1} parent=5 // pred_check
        _
      $region10: #{tpu_custom_call.1} parent=5 // pred_check_branch
        %140 = sbr.rel (%p137) target = $region12
      $region11: #{tpu_custom_call.1} parent=5 // pred_region
        %s141 = ssub.s32 %s14, 1
        // Predicated region
        $region13: #{tpu_custom_call.1} parent=11 // pred_check
          %p142 = pneg %p52
        $region14: #{tpu_custom_call.1} parent=11 // pred_check_branch
          %144 = sbr.rel (%p142) target = $region16
        $region15: #{tpu_custom_call.1} parent=11 // pred_region
          %s145 = smul.u32 8, %s23
          %147 = vsyncadd [#allocation3], 0
          %s148 = smul.addr %s145, 4
          %s149 = smul.addr %s148, 8
          %s150 = scalar_lea.hbm %s0, %s149
          %s151 = sshll.u32 %s150, 4
          %s152 = int_to_ptr.hbm [resolvable:$true] %s151
          %s153 = sshll.u32 [#allocation2], 4
          %s154 = int_to_ptr.vmem [resolvable:$true] %s153
          %159 = dma.hbm_to_vmem [thread:$0]  %s152, 4096, %s154, [#allocation3], 512, 512, 32
        $region16: #{tpu_custom_call.1} parent=11 // pred_fallthru
          _
        // Predicated region
        $region17: #{tpu_custom_call.1} parent=11 // pred_check
          %p160 = pneg %p73
        $region18: #{tpu_custom_call.1} parent=11 // pred_check_branch
          %162 = sbr.rel (%p160) target = $region20
        $region19: #{tpu_custom_call.1} parent=11 // pred_region
          %164 = vsyncadd [#allocation6], 0
          %s165 = sshll.u32 %s1, 4
          %s166 = int_to_ptr.hbm [resolvable:$true] %s165
          %s167 = sshll.u32 [#allocation5], 4
          %s168 = int_to_ptr.vmem [resolvable:$true] %s167
          %173 = dma.hbm_to_vmem [thread:$0]  %s166, 8192, %s168, [#allocation6], 512, 512, 32
        $region20: #{tpu_custom_call.1} parent=11 // pred_fallthru
          _
      $region12: #{tpu_custom_call.1} parent=5 // pred_fallthru
        _
      %p174 = scmp.lt.s32.totalorder %s14, 2
      // Predicated region
      $region21: #{tpu_custom_call.1} parent=5 // pred_check
        %p175 = pneg %p174
      $region22: #{tpu_custom_call.1} parent=5 // pred_check_branch
        %177 = sbr.rel (%p175) target = $region24
      $region23: #{tpu_custom_call.1} parent=5 // pred_region
        // Predicated region
        $region25: #{tpu_custom_call.1} parent=23 // pred_check
          %p178 = pneg %p93
        $region26: #{tpu_custom_call.1} parent=23 // pred_check_branch
          %180 = sbr.rel (%p178) target = $region28
        $region27: #{tpu_custom_call.1} parent=23 // pred_region
          %s181 = sand.u32 %s14, 1
          %s182 = scalar_lea.sflag [#allocation3], %s181
          %s183 = sand.u32 %s83, 1
          %s184 = smul.addr %s183, 256
          %s185 = scalar_lea.vmem [#allocation7], %s184
          %s186 = smul.u32 32, %s22
          %188 = vsyncadd %s182, 0
          %s189 = smul.addr %s186, 8
          %s190 = scalar_lea.hbm %s2, %s189
          %s191 = sshll.u32 %s190, 4
          %s192 = int_to_ptr.hbm [resolvable:$true] %s191
          %s193 = sshll.u32 %s185, 4
          %s194 = int_to_ptr.vmem [resolvable:$true] %s193
          %199 = dma.hbm_to_vmem [thread:$0]  %s192, 4096, %s194, %s182, 128, 128, 8
        $region28: #{tpu_custom_call.1} parent=23 // pred_fallthru
          _
      $region24: #{tpu_custom_call.1} parent=5 // pred_fallthru
        _
      %p200 = scmp.le.s32.totalorder 1, %s14
      %p201 = scmp.lt.s32.totalorder %s14, 3
      %p202 = pnand %p200, %p201
      %p203 = pneg %p202
      // Predicated region
      $region29: #{tpu_custom_call.1} parent=5 // pred_check
        _
      $region30: #{tpu_custom_call.1} parent=5 // pred_check_branch
        %205 = sbr.rel (%p202) target = $region32
      $region31: #{tpu_custom_call.1} parent=5 // pred_region
        %s206 = ssub.s32 %s14, 1
        // Predicated region
        $region33: #{tpu_custom_call.1} parent=31 // pred_check
          %p207 = pneg %p52
        $region34: #{tpu_custom_call.1} parent=31 // pred_check_branch
          %209 = sbr.rel (%p207) target = $region36
        $region35: #{tpu_custom_call.1} parent=31 // pred_region
          %211 = dma.done [#allocation3], 4096
        $region36: #{tpu_custom_call.1} parent=31 // pred_fallthru
          _
        // Predicated region
        $region37: #{tpu_custom_call.1} parent=31 // pred_check
          %p212 = pneg %p73
        $region38: #{tpu_custom_call.1} parent=31 // pred_check_branch
          %214 = sbr.rel (%p212) target = $region40
        $region39: #{tpu_custom_call.1} parent=31 // pred_region
          %216 = dma.done [#allocation6], 8192
        $region40: #{tpu_custom_call.1} parent=31 // pred_fallthru
          _
        %s217 = sand.u32 %s19, 1
        %s218 = scalar_lea.sflag [#allocation3], %s217
        %s219 = sand.u32 %s86, 1
        %s220 = smul.addr %s219, 256
        %s221 = scalar_lea.vmem [#allocation7], %s220
        // Predicated region
        $region41: #{tpu_custom_call.1} parent=31 // pred_check
          %p222 = pneg %p99
        $region42: #{tpu_custom_call.1} parent=31 // pred_check_branch
          %224 = sbr.rel (%p222) target = $region44
        $region43: #{tpu_custom_call.1} parent=31 // pred_region
          %226 = dma.done %s218, 4096
        $region44: #{tpu_custom_call.1} parent=31 // pred_fallthru
          _
        %p227 = pneg %p52
        %p228 = pneg %p49
        %p229 = pneg %p73
        %p230 = pneg %p70
        %s231 = sand.u32 %s19, 1
        %s232 = scalar_lea.sflag [#allocation3], %s231
        %s233 = sand.u32 %s86, 1
        %s234 = smul.addr %s233, 256
        %s235 = scalar_lea.vmem [#allocation7], %s234
        %p236 = pneg %p99
        %p237 = pneg %p96
        %p238 = pneg %p127
        %p239 = pneg %p124
        %s240 = sand.u32 %s114, 1
        %s241 = scalar_lea.sflag [#allocation4], %s240
        %s242 = sand.u32 %s114, 1
        %s243 = smul.addr %s242, 128
        %s244 = scalar_lea.vmem [#allocation8], %s243
        %s245 = smul.u32 8, %s23
        %s246 = smul.u32 32, %s24
        %s247 = smul.u32 8, %s23
        %s248 = smul.u32 2, %s24
        %v249 = vld [vmem:[#allocation2] sm:$0xff]
        %v250 = vld [vmem:[#allocation2 + $0x8] sm:$0xff]
        %v251 = vld [vmem:[#allocation2 + $0x10] sm:$0xff]
        %v252 = vld [vmem:[#allocation2 + $0x18] sm:$0xff]
        %v253 = vld [vmem:[#allocation2 + $0x20] sm:$0xff]
        %v254 = vld [vmem:[#allocation2 + $0x28] sm:$0xff]
        %v255 = vld [vmem:[#allocation2 + $0x30] sm:$0xff]
        %v256 = vld [vmem:[#allocation2 + $0x38] sm:$0xff]
        %v257 = vld [vmem:[#allocation2 + $0x40] sm:$0xff]
        %v258 = vld [vmem:[#allocation2 + $0x48] sm:$0xff]
        %v259 = vld [vmem:[#allocation2 + $0x50] sm:$0xff]
        %v260 = vld [vmem:[#allocation2 + $0x58] sm:$0xff]
        %v261 = vld [vmem:[#allocation2 + $0x60] sm:$0xff]
        %v262 = vld [vmem:[#allocation2 + $0x68] sm:$0xff]
        %v263 = vld [vmem:[#allocation2 + $0x70] sm:$0xff]
        %v264 = vld [vmem:[#allocation2 + $0x78] sm:$0xff]
        %v265 = vld [vmem:[#allocation2 + $0x80] sm:$0xff]
        %v266 = vld [vmem:[#allocation2 + $0x88] sm:$0xff]
        %v267 = vld [vmem:[#allocation2 + $0x90] sm:$0xff]
        %v268 = vld [vmem:[#allocation2 + $0x98] sm:$0xff]
        %v269 = vld [vmem:[#allocation2 + $0xa0] sm:$0xff]
        %v270 = vld [vmem:[#allocation2 + $0xa8] sm:$0xff]
        %v271 = vld [vmem:[#allocation2 + $0xb0] sm:$0xff]
        %v272 = vld [vmem:[#allocation2 + $0xb8] sm:$0xff]
        %v273 = vld [vmem:[#allocation2 + $0xc0] sm:$0xff]
        %v274 = vld [vmem:[#allocation2 + $0xc8] sm:$0xff]
        %v275 = vld [vmem:[#allocation2 + $0xd0] sm:$0xff]
        %v276 = vld [vmem:[#allocation2 + $0xd8] sm:$0xff]
        %v277 = vld [vmem:[#allocation2 + $0xe0] sm:$0xff]
        %v278 = vld [vmem:[#allocation2 + $0xe8] sm:$0xff]
        %v279 = vld [vmem:[#allocation2 + $0xf0] sm:$0xff]
        %v280 = vld [vmem:[#allocation2 + $0xf8] sm:$0xff]
        %v281 = vpack.c.bf16 %v253, %v249
        %v282 = vpack.c.bf16 %v254, %v250
        %v283 = vpack.c.bf16 %v255, %v251
        %v284 = vpack.c.bf16 %v256, %v252
        %v285 = vpack.c.bf16 %v261, %v257
        %v286 = vpack.c.bf16 %v262, %v258
        %v287 = vpack.c.bf16 %v263, %v259
        %v288 = vpack.c.bf16 %v264, %v260
        %v289 = vpack.c.bf16 %v269, %v265
        %v290 = vpack.c.bf16 %v270, %v266
        %v291 = vpack.c.bf16 %v271, %v267
        %v292 = vpack.c.bf16 %v272, %v268
        %v293 = vpack.c.bf16 %v277, %v273
        %v294 = vpack.c.bf16 %v278, %v274
        %v295 = vpack.c.bf16 %v279, %v275
        %v296 = vpack.c.bf16 %v280, %v276
        %v297 = vld [vmem:[#allocation5] sm:$0xff]
        %v298 = vld [vmem:[#allocation5 + $0x8] sm:$0xff]
        %v299 = vld [vmem:[#allocation5 + $0x10] sm:$0xff]
        %v300 = vld [vmem:[#allocation5 + $0x18] sm:$0xff]
        %v301 = vld [vmem:[#allocation5 + $0x20] sm:$0xff]
        %v302 = vld [vmem:[#allocation5 + $0x28] sm:$0xff]
        %v303 = vld [vmem:[#allocation5 + $0x30] sm:$0xff]
        %v304 = vld [vmem:[#allocation5 + $0x38] sm:$0xff]
        %v305 = vld [vmem:[#allocation5 + $0x40] sm:$0xff]
        %v306 = vld [vmem:[#allocation5 + $0x48] sm:$0xff]
        %v307 = vld [vmem:[#allocation5 + $0x50] sm:$0xff]
        %v308 = vld [vmem:[#allocation5 + $0x58] sm:$0xff]
        %v309 = vld [vmem:[#allocation5 + $0x60] sm:$0xff]
        %v310 = vld [vmem:[#allocation5 + $0x68] sm:$0xff]
        %v311 = vld [vmem:[#allocation5 + $0x70] sm:$0xff]
        %v312 = vld [vmem:[#allocation5 + $0x78] sm:$0xff]
        %v313 = vld [vmem:[#allocation5 + $0x80] sm:$0xff]
        %v314 = vld [vmem:[#allocation5 + $0x88] sm:$0xff]
        %v315 = vld [vmem:[#allocation5 + $0x90] sm:$0xff]
        %v316 = vld [vmem:[#allocation5 + $0x98] sm:$0xff]
        %v317 = vld [vmem:[#allocation5 + $0xa0] sm:$0xff]
        %v318 = vld [vmem:[#allocation5 + $0xa8] sm:$0xff]
        %v319 = vld [vmem:[#allocation5 + $0xb0] sm:$0xff]
        %v320 = vld [vmem:[#allocation5 + $0xb8] sm:$0xff]
        %v321 = vld [vmem:[#allocation5 + $0xc0] sm:$0xff]
        %v322 = vld [vmem:[#allocation5 + $0xc8] sm:$0xff]
        %v323 = vld [vmem:[#allocation5 + $0xd0] sm:$0xff]
        %v324 = vld [vmem:[#allocation5 + $0xd8] sm:$0xff]
        %v325 = vld [vmem:[#allocation5 + $0xe0] sm:$0xff]
        %v326 = vld [vmem:[#allocation5 + $0xe8] sm:$0xff]
        %v327 = vld [vmem:[#allocation5 + $0xf0] sm:$0xff]
        %v328 = vld [vmem:[#allocation5 + $0xf8] sm:$0xff]
        %v329 = vld [vmem:[#allocation5 + $0x100] sm:$0xff]
        %v330 = vld [vmem:[#allocation5 + $0x108] sm:$0xff]
        %v331 = vld [vmem:[#allocation5 + $0x110] sm:$0xff]
        %v332 = vld [vmem:[#allocation5 + $0x118] sm:$0xff]
        %v333 = vld [vmem:[#allocation5 + $0x120] sm:$0xff]
        %v334 = vld [vmem:[#allocation5 + $0x128] sm:$0xff]
        %v335 = vld [vmem:[#allocation5 + $0x130] sm:$0xff]
        %v336 = vld [vmem:[#allocation5 + $0x138] sm:$0xff]
        %v337 = vld [vmem:[#allocation5 + $0x140] sm:$0xff]
        %v338 = vld [vmem:[#allocation5 + $0x148] sm:$0xff]
        %v339 = vld [vmem:[#allocation5 + $0x150] sm:$0xff]
        %v340 = vld [vmem:[#allocation5 + $0x158] sm:$0xff]
        %v341 = vld [vmem:[#allocation5 + $0x160] sm:$0xff]
        %v342 = vld [vmem:[#allocation5 + $0x168] sm:$0xff]
        %v343 = vld [vmem:[#allocation5 + $0x170] sm:$0xff]
        %v344 = vld [vmem:[#allocation5 + $0x178] sm:$0xff]
        %v345 = vld [vmem:[#allocation5 + $0x180] sm:$0xff]
        %v346 = vld [vmem:[#allocation5 + $0x188] sm:$0xff]
        %v347 = vld [vmem:[#allocation5 + $0x190] sm:$0xff]
        %v348 = vld [vmem:[#allocation5 + $0x198] sm:$0xff]
        %v349 = vld [vmem:[#allocation5 + $0x1a0] sm:$0xff]
        %v350 = vld [vmem:[#allocation5 + $0x1a8] sm:$0xff]
        %v351 = vld [vmem:[#allocation5 + $0x1b0] sm:$0xff]
        %v352 = vld [vmem:[#allocation5 + $0x1b8] sm:$0xff]
        %v353 = vld [vmem:[#allocation5 + $0x1c0] sm:$0xff]
        %v354 = vld [vmem:[#allocation5 + $0x1c8] sm:$0xff]
        %v355 = vld [vmem:[#allocation5 + $0x1d0] sm:$0xff]
        %v356 = vld [vmem:[#allocation5 + $0x1d8] sm:$0xff]
        %v357 = vld [vmem:[#allocation5 + $0x1e0] sm:$0xff]
        %v358 = vld [vmem:[#allocation5 + $0x1e8] sm:$0xff]
        %v359 = vld [vmem:[#allocation5 + $0x1f0] sm:$0xff]
        %v360 = vld [vmem:[#allocation5 + $0x1f8] sm:$0xff]
        %v361 = vpack.c.bf16 %v301, %v297
        %v362 = vpack.c.bf16 %v302, %v298
        %v363 = vpack.c.bf16 %v303, %v299
        %v364 = vpack.c.bf16 %v304, %v300
        %v365 = vpack.c.bf16 %v309, %v305
        %v366 = vpack.c.bf16 %v310, %v306
        %v367 = vpack.c.bf16 %v311, %v307
        %v368 = vpack.c.bf16 %v312, %v308
        %v369 = vpack.c.bf16 %v317, %v313
        %v370 = vpack.c.bf16 %v318, %v314
        %v371 = vpack.c.bf16 %v319, %v315
        %v372 = vpack.c.bf16 %v320, %v316
        %v373 = vpack.c.bf16 %v325, %v321
        %v374 = vpack.c.bf16 %v326, %v322
        %v375 = vpack.c.bf16 %v327, %v323
        %v376 = vpack.c.bf16 %v328, %v324
        %v377 = vpack.c.bf16 %v333, %v329
        %v378 = vpack.c.bf16 %v334, %v330
        %v379 = vpack.c.bf16 %v335, %v331
        %v380 = vpack.c.bf16 %v336, %v332
        %v381 = vpack.c.bf16 %v341, %v337
        %v382 = vpack.c.bf16 %v342, %v338
        %v383 = vpack.c.bf16 %v343, %v339
        %v384 = vpack.c.bf16 %v344, %v340
        %v385 = vpack.c.bf16 %v349, %v345
        %v386 = vpack.c.bf16 %v350, %v346
        %v387 = vpack.c.bf16 %v351, %v347
        %v388 = vpack.c.bf16 %v352, %v348
        %v389 = vpack.c.bf16 %v357, %v353
        %v390 = vpack.c.bf16 %v358, %v354
        %v391 = vpack.c.bf16 %v359, %v355
        %v392 = vpack.c.bf16 %v360, %v356
        %393 = vmatpush.bf16.xpose.msra.mxu0 %v389
        %394 = vmatpush.bf16.xpose.msra.mxu0 %v385
        %395 = vmatpush.bf16.xpose.msra.mxu0 %v381
        %396 = vmatpush.bf16.xpose.msra.mxu0 %v377
        %397 = vmatpush.bf16.xpose.msra.mxu0 %v373
        %398 = vmatpush.bf16.xpose.msra.mxu0 %v369
        %399 = vmatpush.bf16.xpose.msra.mxu0 %v365
        %400 = vmatpush.bf16.xpose.msra.mxu0 %v361
        %401 = vmatmul.bf16.gmra.mxu0 %v281
        %v402 = vpop.f32.mrf.mxu0
        %v403 = vadd.f32 0.0, %v402
        %v404 = vpop.f32.mrf.mxu0
        %v405 = vadd.f32 0.0, %v404
        %406 = vmatmul.bf16.gmra.mxu0 %v285
        %v407 = vpop.f32.mrf.mxu0
        %v408 = vadd.f32 0.0, %v407
        %v409 = vpop.f32.mrf.mxu0
        %v410 = vadd.f32 0.0, %v409
        %411 = vmatmul.bf16.gmra.mxu0 %v289
        %v412 = vpop.f32.mrf.mxu0
        %v413 = vadd.f32 0.0, %v412
        %v414 = vpop.f32.mrf.mxu0
        %v415 = vadd.f32 0.0, %v414
        %416 = vmatmul.bf16.gmra.mxu0 %v293
        %v417 = vpop.f32.mrf.mxu0
        %v418 = vadd.f32 0.0, %v417
        %v419 = vpop.f32.mrf.mxu0
        %v420 = vadd.f32 0.0, %v419
        %421 = vdwg.mxu0
        %422 = vmatpush.bf16.xpose.msra.mxu0 %v390
        %423 = vmatpush.bf16.xpose.msra.mxu0 %v386
        %424 = vmatpush.bf16.xpose.msra.mxu0 %v382
        %425 = vmatpush.bf16.xpose.msra.mxu0 %v378
        %426 = vmatpush.bf16.xpose.msra.mxu0 %v374
        %427 = vmatpush.bf16.xpose.msra.mxu0 %v370
        %428 = vmatpush.bf16.xpose.msra.mxu0 %v366
        %429 = vmatpush.bf16.xpose.msra.mxu0 %v362
        %430 = vmatmul.bf16.gmra.mxu0 %v282
        %v431 = vpop.f32.mrf.mxu0
        %v432 = vadd.f32 %v403, %v431
        %v433 = vpop.f32.mrf.mxu0
        %v434 = vadd.f32 %v405, %v433
        %435 = vmatmul.bf16.gmra.mxu0 %v286
        %v436 = vpop.f32.mrf.mxu0
        %v437 = vadd.f32 %v408, %v436
        %v438 = vpop.f32.mrf.mxu0
        %v439 = vadd.f32 %v410, %v438
        %440 = vmatmul.bf16.gmra.mxu0 %v290
        %v441 = vpop.f32.mrf.mxu0
        %v442 = vadd.f32 %v413, %v441
        %v443 = vpop.f32.mrf.mxu0
        %v444 = vadd.f32 %v415, %v443
        %445 = vmatmul.bf16.gmra.mxu0 %v294
        %v446 = vpop.f32.mrf.mxu0
        %v447 = vadd.f32 %v418, %v446
        %v448 = vpop.f32.mrf.mxu0
        %v449 = vadd.f32 %v420, %v448
        %450 = vdwg.mxu0
        %451 = vmatpush.bf16.xpose.msra.mxu0 %v391
        %452 = vmatpush.bf16.xpose.msra.mxu0 %v387
        %453 = vmatpush.bf16.xpose.msra.mxu0 %v383
        %454 = vmatpush.bf16.xpose.msra.mxu0 %v379
        %455 = vmatpush.bf16.xpose.msra.mxu0 %v375
        %456 = vmatpush.bf16.xpose.msra.mxu0 %v371
        %457 = vmatpush.bf16.xpose.msra.mxu0 %v367
        %458 = vmatpush.bf16.xpose.msra.mxu0 %v363
        %459 = vmatmul.bf16.gmra.mxu0 %v283
        %v460 = vpop.f32.mrf.mxu0
        %v461 = vadd.f32 %v432, %v460
        %v462 = vpop.f32.mrf.mxu0
        %v463 = vadd.f32 %v434, %v462
        %464 = vmatmul.bf16.gmra.mxu0 %v287
        %v465 = vpop.f32.mrf.mxu0
        %v466 = vadd.f32 %v437, %v465
        %v467 = vpop.f32.mrf.mxu0
        %v468 = vadd.f32 %v439, %v467
        %469 = vmatmul.bf16.gmra.mxu0 %v291
        %v470 = vpop.f32.mrf.mxu0
        %v471 = vadd.f32 %v442, %v470
        %v472 = vpop.f32.mrf.mxu0
        %v473 = vadd.f32 %v444, %v472
        %474 = vmatmul.bf16.gmra.mxu0 %v295
        %v475 = vpop.f32.mrf.mxu0
        %v476 = vadd.f32 %v447, %v475
        %v477 = vpop.f32.mrf.mxu0
        %v478 = vadd.f32 %v449, %v477
        %479 = vdwg.mxu0
        %480 = vmatpush.bf16.xpose.msra.mxu0 %v392
        %481 = vmatpush.bf16.xpose.msra.mxu0 %v388
        %482 = vmatpush.bf16.xpose.msra.mxu0 %v384
        %483 = vmatpush.bf16.xpose.msra.mxu0 %v380
        %484 = vmatpush.bf16.xpose.msra.mxu0 %v376
        %485 = vmatpush.bf16.xpose.msra.mxu0 %v372
        %486 = vmatpush.bf16.xpose.msra.mxu0 %v368
        %487 = vmatpush.bf16.xpose.msra.mxu0 %v364
        %488 = vmatmul.bf16.gmra.mxu0 %v284
        %v489 = vpop.f32.mrf.mxu0
        %v490 = vadd.f32 %v461, %v489
        %v491 = vpop.f32.mrf.mxu0
        %v492 = vadd.f32 %v463, %v491
        %493 = vmatmul.bf16.gmra.mxu0 %v288
        %v494 = vpop.f32.mrf.mxu0
        %v495 = vadd.f32 %v466, %v494
        %v496 = vpop.f32.mrf.mxu0
        %v497 = vadd.f32 %v468, %v496
        %498 = vmatmul.bf16.gmra.mxu0 %v292
        %v499 = vpop.f32.mrf.mxu0
        %v500 = vadd.f32 %v471, %v499
        %v501 = vpop.f32.mrf.mxu0
        %v502 = vadd.f32 %v473, %v501
        %503 = vmatmul.bf16.gmra.mxu0 %v296
        %v504 = vpop.f32.mrf.mxu0
        %v505 = vadd.f32 %v476, %v504
        %v506 = vpop.f32.mrf.mxu0
        %v507 = vadd.f32 %v478, %v506
        %508 = vdwg.mxu0
        %v509 = vmax.f32 %v490, 0.0
        %v510 = vmax.f32 %v492, 0.0
        %v511 = vmax.f32 %v495, 0.0
        %v512 = vmax.f32 %v497, 0.0
        %v513 = vmax.f32 %v500, 0.0
        %v514 = vmax.f32 %v502, 0.0
        %v515 = vmax.f32 %v505, 0.0
        %v516 = vmax.f32 %v507, 0.0
        %v517 = vld [vmem:[%s221] sm:$0xff]
        %v518 = vld [vmem:[%s221 + $0x8] sm:$0xff]
        %v519 = vld [vmem:[%s221 + $0x10] sm:$0xff]
        %v520 = vld [vmem:[%s221 + $0x18] sm:$0xff]
        %v521 = vld [vmem:[%s221 + $0x20] sm:$0xff]
        %v522 = vld [vmem:[%s221 + $0x28] sm:$0xff]
        %v523 = vld [vmem:[%s221 + $0x30] sm:$0xff]
        %v524 = vld [vmem:[%s221 + $0x38] sm:$0xff]
        %v525 = vld [vmem:[%s221 + $0x40] sm:$0xff]
        %v526 = vld [vmem:[%s221 + $0x48] sm:$0xff]
        %v527 = vld [vmem:[%s221 + $0x50] sm:$0xff]
        %v528 = vld [vmem:[%s221 + $0x58] sm:$0xff]
        %v529 = vld [vmem:[%s221 + $0x60] sm:$0xff]
        %v530 = vld [vmem:[%s221 + $0x68] sm:$0xff]
        %v531 = vld [vmem:[%s221 + $0x70] sm:$0xff]
        %v532 = vld [vmem:[%s221 + $0x78] sm:$0xff]
        %v533 = vld [vmem:[%s221 + $0x80] sm:$0xff]
        %v534 = vld [vmem:[%s221 + $0x88] sm:$0xff]
        %v535 = vld [vmem:[%s221 + $0x90] sm:$0xff]
        %v536 = vld [vmem:[%s221 + $0x98] sm:$0xff]
        %v537 = vld [vmem:[%s221 + $0xa0] sm:$0xff]
        %v538 = vld [vmem:[%s221 + $0xa8] sm:$0xff]
        %v539 = vld [vmem:[%s221 + $0xb0] sm:$0xff]
        %v540 = vld [vmem:[%s221 + $0xb8] sm:$0xff]
        %v541 = vld [vmem:[%s221 + $0xc0] sm:$0xff]
        %v542 = vld [vmem:[%s221 + $0xc8] sm:$0xff]
        %v543 = vld [vmem:[%s221 + $0xd0] sm:$0xff]
        %v544 = vld [vmem:[%s221 + $0xd8] sm:$0xff]
        %v545 = vld [vmem:[%s221 + $0xe0] sm:$0xff]
        %v546 = vld [vmem:[%s221 + $0xe8] sm:$0xff]
        %v547 = vld [vmem:[%s221 + $0xf0] sm:$0xff]
        %v548 = vld [vmem:[%s221 + $0xf8] sm:$0xff]
        %v549 = vpack.c.bf16 %v518, %v517
        %v550 = vpack.c.bf16 %v520, %v519
        %v551 = vpack.c.bf16 %v522, %v521
        %v552 = vpack.c.bf16 %v524, %v523
        %v553 = vpack.c.bf16 %v526, %v525
        %v554 = vpack.c.bf16 %v528, %v527
        %v555 = vpack.c.bf16 %v530, %v529
        %v556 = vpack.c.bf16 %v532, %v531
        %v557 = vpack.c.bf16 %v534, %v533
        %v558 = vpack.c.bf16 %v536, %v535
        %v559 = vpack.c.bf16 %v538, %v537
        %v560 = vpack.c.bf16 %v540, %v539
        %v561 = vpack.c.bf16 %v542, %v541
        %v562 = vpack.c.bf16 %v544, %v543
        %v563 = vpack.c.bf16 %v546, %v545
        %v564 = vpack.c.bf16 %v548, %v547
        %v565 = vpack.c.bf16 %v510, %v509
        %v566 = vpack.c.bf16 %v512, %v511
        %v567 = vpack.c.bf16 %v514, %v513
        %v568 = vpack.c.bf16 %v516, %v515
        %569 = vmatpush.bf16.xpose.msra.mxu0 %v556
        %570 = vmatpush.bf16.xpose.msra.mxu0 %v555
        %571 = vmatpush.bf16.xpose.msra.mxu0 %v554
        %572 = vmatpush.bf16.xpose.msra.mxu0 %v553
        %573 = vmatpush.bf16.xpose.msra.mxu0 %v552
        %574 = vmatpush.bf16.xpose.msra.mxu0 %v551
        %575 = vmatpush.bf16.xpose.msra.mxu0 %v550
        %576 = vmatpush.bf16.xpose.msra.mxu0 %v549
        %577 = vmatmul.bf16.gmra.mxu0 %v565
        %v578 = vpop.f32.mrf.mxu0
        %v579 = vadd.f32 0.0, %v578
        %v580 = vpop.f32.mrf.mxu0
        %v581 = vadd.f32 0.0, %v580
        %582 = vmatmul.bf16.gmra.mxu0 %v566
        %v583 = vpop.f32.mrf.mxu0
        %v584 = vadd.f32 0.0, %v583
        %v585 = vpop.f32.mrf.mxu0
        %v586 = vadd.f32 0.0, %v585
        %587 = vmatmul.bf16.gmra.mxu0 %v567
        %v588 = vpop.f32.mrf.mxu0
        %v589 = vadd.f32 0.0, %v588
        %v590 = vpop.f32.mrf.mxu0
        %v591 = vadd.f32 0.0, %v590
        %592 = vmatmul.bf16.gmra.mxu0 %v568
        %v593 = vpop.f32.mrf.mxu0
        %v594 = vadd.f32 0.0, %v593
        %v595 = vpop.f32.mrf.mxu0
        %v596 = vadd.f32 0.0, %v595
        %597 = vdwg.mxu0
        %598 = vmatpush.bf16.xpose.msra.mxu0 %v564
        %599 = vmatpush.bf16.xpose.msra.mxu0 %v563
        %600 = vmatpush.bf16.xpose.msra.mxu0 %v562
        %601 = vmatpush.bf16.xpose.msra.mxu0 %v561
        %602 = vmatpush.bf16.xpose.msra.mxu0 %v560
        %603 = vmatpush.bf16.xpose.msra.mxu0 %v559
        %604 = vmatpush.bf16.xpose.msra.mxu0 %v558
        %605 = vmatpush.bf16.xpose.msra.mxu0 %v557
        %606 = vmatmul.bf16.gmra.mxu0 %v565
        %v607 = vpop.f32.mrf.mxu0
        %v608 = vadd.f32 0.0, %v607
        %v609 = vpop.f32.mrf.mxu0
        %v610 = vadd.f32 0.0, %v609
        %611 = vmatmul.bf16.gmra.mxu0 %v566
        %v612 = vpop.f32.mrf.mxu0
        %v613 = vadd.f32 0.0, %v612
        %v614 = vpop.f32.mrf.mxu0
        %v615 = vadd.f32 0.0, %v614
        %616 = vmatmul.bf16.gmra.mxu0 %v567
        %v617 = vpop.f32.mrf.mxu0
        %v618 = vadd.f32 0.0, %v617
        %v619 = vpop.f32.mrf.mxu0
        %v620 = vadd.f32 0.0, %v619
        %621 = vmatmul.bf16.gmra.mxu0 %v568
        %v622 = vpop.f32.mrf.mxu0
        %v623 = vadd.f32 0.0, %v622
        %v624 = vpop.f32.mrf.mxu0
        %v625 = vadd.f32 0.0, %v624
        %626 = vdwg.mxu0
        %v627 = vmax.f32 %v579, 0.0
        %v628 = vmax.f32 %v608, 0.0
        %v629 = vmax.f32 %v581, 0.0
        %v630 = vmax.f32 %v610, 0.0
        %v631 = vmax.f32 %v584, 0.0
        %v632 = vmax.f32 %v613, 0.0
        %v633 = vmax.f32 %v586, 0.0
        %v634 = vmax.f32 %v615, 0.0
        %v635 = vmax.f32 %v589, 0.0
        %v636 = vmax.f32 %v618, 0.0
        %v637 = vmax.f32 %v591, 0.0
        %v638 = vmax.f32 %v620, 0.0
        %v639 = vmax.f32 %v594, 0.0
        %v640 = vmax.f32 %v623, 0.0
        %v641 = vmax.f32 %v596, 0.0
        %v642 = vmax.f32 %v625, 0.0
        %643 = vst [vmem:[%s244] sm:$0xff] %v627
        %644 = vst [vmem:[%s244 + $0x8] sm:$0xff] %v628
        %645 = vst [vmem:[%s244 + $0x10] sm:$0xff] %v629
        %646 = vst [vmem:[%s244 + $0x18] sm:$0xff] %v630
        %647 = vst [vmem:[%s244 + $0x20] sm:$0xff] %v631
        %648 = vst [vmem:[%s244 + $0x28] sm:$0xff] %v632
        %649 = vst [vmem:[%s244 + $0x30] sm:$0xff] %v633
        %650 = vst [vmem:[%s244 + $0x38] sm:$0xff] %v634
        %651 = vst [vmem:[%s244 + $0x40] sm:$0xff] %v635
        %652 = vst [vmem:[%s244 + $0x48] sm:$0xff] %v636
        %653 = vst [vmem:[%s244 + $0x50] sm:$0xff] %v637
        %654 = vst [vmem:[%s244 + $0x58] sm:$0xff] %v638
        %655 = vst [vmem:[%s244 + $0x60] sm:$0xff] %v639
        %656 = vst [vmem:[%s244 + $0x68] sm:$0xff] %v640
        %657 = vst [vmem:[%s244 + $0x70] sm:$0xff] %v641
        %658 = vst [vmem:[%s244 + $0x78] sm:$0xff] %v642
        %s659 = sand.u32 %s114, 1
        %s660 = scalar_lea.sflag [#allocation4], %s659
        %s661 = sand.u32 %s114, 1
        %s662 = smul.addr %s661, 128
        %s663 = scalar_lea.vmem [#allocation8], %s662
        // Predicated region
        $region45: #{tpu_custom_call.1} parent=31 // pred_check
          %p664 = pneg %p124
        $region46: #{tpu_custom_call.1} parent=31 // pred_check_branch
          %666 = sbr.rel (%p664) target = $region48
        $region47: #{tpu_custom_call.1} parent=31 // pred_region
          %s667 = smul.u32 8, %s23
          %s668 = smul.u32 2, %s24
          %670 = vsyncadd %s660, 0
          %s671 = smul.addr %s667, 4
          %s672 = sadd.s32 %s668, %s671
          %s673 = smul.addr %s672, 8
          %s674 = scalar_lea.hbm %s3, %s673
          %s675 = sshll.u32 %s663, 4
          %s676 = int_to_ptr.vmem [resolvable:$true] %s675
          %s677 = sshll.u32 %s674, 4
          %s678 = int_to_ptr.hbm [resolvable:$true] %s677
          %683 = dma.vmem_to_hbm [thread:$0]  %s676, 2048, %s678, %s660, 256, 512, 16
        $region48: #{tpu_custom_call.1} parent=31 // pred_fallthru
          _
      $region32: #{tpu_custom_call.1} parent=5 // pred_fallthru
        _
      %p684 = scmp.le.s32.totalorder 2, %s14
      // Predicated region
      $region49: #{tpu_custom_call.1} parent=5 // pred_check
        %p685 = pneg %p684
      $region50: #{tpu_custom_call.1} parent=5 // pred_check_branch
        %687 = sbr.rel (%p685) target = $region52
      $region51: #{tpu_custom_call.1} parent=5 // pred_region
        %s688 = ssub.s32 %s14, 2
        // Predicated region
        $region53: #{tpu_custom_call.1} parent=51 // pred_check
          %p689 = pneg %p130
        $region54: #{tpu_custom_call.1} parent=51 // pred_check_branch
          %691 = sbr.rel (%p689) target = $region56
        $region55: #{tpu_custom_call.1} parent=51 // pred_region
          %s692 = sand.u32 %s115, 1
          %s693 = scalar_lea.sflag [#allocation4], %s692
          %s694 = sand.u32 %s115, 1
          %s695 = smul.addr %s694, 128
          %s696 = scalar_lea.vmem [#allocation8], %s695
          %698 = dma.done %s693, 2048
        $region56: #{tpu_custom_call.1} parent=51 // pred_fallthru
          _
      $region52: #{tpu_custom_call.1} parent=5 // pred_fallthru
        _
    $region6: #{tpu_custom_call.1} parent=1 // loop_footer
      %s18 = sadd.s32 1, %s14
    $region7: #{tpu_custom_call.1} parent=1 // loop_footer_branch
      %13 = sbr.rel target = $region3
    $region8: #{tpu_custom_call.1} parent=1 // loop_exit
      _
    %699 = vsyncpa [#allocation3], 1
    %s700 = scalar_lea.sflag [#allocation3], 1
    %701 = vsyncpa %s700, 1
    %702 = vsyncpa [#allocation6], 1
    %703 = vsyncpa [#allocation4], 1
    %s704 = scalar_lea.sflag [#allocation4], 1
    %705 = vsyncpa %s704, 1

</llo_original>
